<compile_context>
chip_gen: v5e
topology: v5e:2x2
jax: 0.10.0
libtpu: 0.0.40
codegen_flags: <defaults>
</compile_context>

<pallas_src>
import functools

import jax
import jax.numpy as jnp
from jax.experimental import pallas as pl
from jax.experimental.pallas import tpu as pltpu


def _pixel_shuffle3d_kernel(x_ref, s_ref, o_ref, *, acc_dtype, precision):
    """x_ref: (1, R^2, TD*H, W)  planes ordered (rh, rw), rows (td, h), lanes w
       s_ref: (R^2*W, R*W*R)     0/1 permutation: lane (rh, rw, w) -> (rh, w, rw)
       o_ref: (TD, 1, H, R*W*R)"""
    n_planes = x_ref.shape[1]
    pieces = [x_ref[0, q] for q in range(n_planes)]          # each (TD*H, W)
    blk = pieces[0] if n_planes == 1 else jnp.concatenate(pieces, axis=-1)
    # Single batched permutation matmul for the whole depth tile.
    res = jnp.dot(blk, s_ref[...], precision=precision,
                  preferred_element_type=acc_dtype)           # (TD*H, R*W*R)
    # Layout-trivial split of the row dim (H is a multiple of the sublane tile).
    o_ref[...] = res.reshape(o_ref.shape).astype(o_ref.dtype)


def _perm_matrix(W, R, dtype):
    # S[(rh*R + rw)*W + w, rh*(W*R) + w*R + rw] = 1  (one 1 per row/column).
    i = jnp.arange(R * R * W)
    rh = i // (R * W)
    rw = (i // W) % R
    w = i % W
    cols = rh * (W * R) + w * R + rw
    return jnp.zeros((R * R * W, R * W * R), dtype).at[i, cols].set(1)


def _round_up(a, b):
    return -(-a // b) * b


def _vmem_budget_bytes():
    """Generation-aware, conservative VMEM budget for the per-step footprint."""
    cap = 128 << 20
    try:
        cap = int(getattr(pltpu.get_tpu_info(), "vmem_capacity_bytes", cap))
    except Exception:
        pass
    # Stay well under every generation's default scoped-VMEM limit
    # (16 MiB v5e, 32 MiB v6e/v7x); naturally smaller on v7x (64 MiB physical).
    return max(2 << 20, min(cap // 10, 24 << 20))


def _pick_depth_tile(D, H, W, R, itemsize, budget):
    """Largest divisor of D whose lane-padded, double-buffered blocks fit VMEM."""
    sub = 8 * (4 // itemsize)            # sublane tile: 8 rows (f32), 16 (bf16/f16)
    lane = 128
    rrw, rwr = R * R * W, R * W * R
    s_bytes = 2 * _round_up(rrw, sub) * _round_up(rwr, lane) * itemsize
    best = 1
    for td in range(1, D + 1):
        if D % td:
            continue
        rows = td * H
        in_b = 2 * R * R * _round_up(rows, sub) * _round_up(W, lane) * itemsize
        out_b = 2 * td * _round_up(H, sub) * _round_up(rwr, lane) * itemsize
        tmp_b = _round_up(rows, sub) * (_round_up(rrw, lane) + _round_up(rwr, lane)) * itemsize
        if in_b + out_b + tmp_b + s_bytes <= budget:
            best = td
    return best


def _xla_pixel_shuffle3d(x, B, C, R, D, H, W):
    y = x.reshape(B, C, R, R, R, D, H, W)
    y = jnp.transpose(y, (0, 1, 5, 2, 6, 3, 7, 4))
    return y.reshape(B, C, D * R, H * R, W * R)


def pixel_shuffle3d(x, upscale_factor):
    """x: (B, C*R^3, D, H, W) -> (B, C, D*R, H*R, W*R), matching PixelShuffle3d."""
    R = int(upscale_factor)
    B, CR3, D, H, W = x.shape
    R3 = R ** 3
    assert CR3 % R3 == 0, "in_channels must be divisible by upscale_factor**3"
    C = CR3 // R3
    if R == 1:
        return x.reshape(B, C, D, H, W)

    dtype = x.dtype
    itemsize = jnp.dtype(dtype).itemsize
    supported = dtype in (jnp.float32, jnp.bfloat16, jnp.float16)
    if supported:
        sub = 8 * (4 // itemsize)        # 8 rows (f32) / 16 rows (bf16, f16)
        supported = (H % sub == 0)
    if not supported:
        # TODO(synk): integer dtypes (no MXU permutation trick / no int MXU on
        # v7x) and H not a multiple of the sublane tile use the XLA transpose.
        return _xla_pixel_shuffle3d(x, B, C, R, D, H, W)

    # Native-dtype / exact-precision matmul selection.
    if dtype == jnp.float32:
        acc_dtype, precision = jnp.float32, jax.lax.Precision.HIGHEST
    elif dtype == jnp.bfloat16:
        acc_dtype, precision = jnp.bfloat16, None
    else:  # float16
        acc_dtype, precision = jnp.float32, None

    RWR = R * W * R
    # Free (view-only) regroupings:
    #   input : (B, C*R^3, D, H, W)      -> (B*C, R_rd, R^2_(rh,rw), D*H, W)
    #   output: (B*C, D, R_rd, H, (rh,w,rw)) -> (B, C, D*R, H*R, W*R)
    xv = x.reshape(B * C, R, R * R, D * H, W)
    S = _perm_matrix(W, R, dtype)

    TD = _pick_depth_tile(D, H, W, R, itemsize, _vmem_budget_bytes())

    out = pl.pallas_call(
        functools.partial(_pixel_shuffle3d_kernel,
                          acc_dtype=acc_dtype, precision=precision),
        out_shape=jax.ShapeDtypeStruct((B * C, D, R, H, RWR), dtype),
        grid=(B * C, D // TD, R),
        in_specs=[
            pl.BlockSpec((None, 1, R * R, TD * H, W),
                         lambda bc, dt, rd: (bc, rd, 0, dt, 0)),
            pl.BlockSpec((R * R * W, RWR), lambda bc, dt, rd: (0, 0)),
        ],
        out_specs=pl.BlockSpec((None, TD, 1, H, RWR),
                               lambda bc, dt, rd: (bc, dt, rd, 0, 0)),
        compiler_params=pltpu.CompilerParams(
            dimension_semantics=("parallel", "parallel", "parallel")),
    )(xv, S)

    return out.reshape(B, C, D * R, H * R, W * R)


if __name__ == "__main__":
    key = jax.random.PRNGKey(0)
    B, C, R = 2, 4, 2
    D = H = W = 16

    # float32 path (precision=HIGHEST -> exact permutation).
    x = jax.random.normal(key, (B, C * R ** 3, D, H, W), jnp.float32)
    out = pixel_shuffle3d(x, R)
    jax.block_until_ready(out)
    ref = _xla_pixel_shuffle3d(x, B, C, R, D, H, W)
    assert out.shape == (B, C, D * R, H * R, W * R), out.shape
    err = float(jnp.max(jnp.abs(out - ref)))
    assert err <= 1e-6, err

    # bfloat16 path (native bf16 matmul, no f32 round-trip).
    xb = x.astype(jnp.bfloat16)
    outb = pixel_shuffle3d(xb, R)
    jax.block_until_ready(outb)
    refb = _xla_pixel_shuffle3d(xb, B, C, R, D, H, W)
    errb = float(jnp.max(jnp.abs(outb.astype(jnp.float32) - refb.astype(jnp.float32))))
    assert errb <= 1e-2, errb

    print("KERNEL_OK")
</pallas_src>

<mosaic_0001>
module attributes {stable_mosaic.version = 11 : i64} {
  func.func @_pixel_shuffle3d_kernel(%arg0: i32, %arg1: i32, %arg2: i32, %arg3: memref<1x1x4x256x16xf32, #tpu.memory_space<vmem>>, %arg4: memref<64x64xf32, #tpu.memory_space<vmem>>, %arg5: memref<1x16x1x16x64xf32, #tpu.memory_space<vmem>>) attributes {dimension_semantics = [#tpu.dimension_semantics<parallel>, #tpu.dimension_semantics<parallel>, #tpu.dimension_semantics<parallel>], iteration_bounds = array<i64: 8, 1, 2>, scalar_prefetch = 0 : i64, scratch_operands = 0 : i64, tpu.core_type = #tpu.core_type<tc>, window_params = [{transform_indices = @transform_0, window_bounds = array<i64: 1, 1, 4, 256, 16>}, {pipeline_mode = #tpu.pipeline_mode<synchronous>, transform_indices = @transform_1, window_bounds = array<i64: 64, 64>}, {transform_indices = @transform_2, window_bounds = array<i64: 1, 16, 1, 16, 64>}]} {
    %c0 = arith.constant 0 : index
    %c0_0 = arith.constant 0 : index
    %c0_1 = arith.constant 0 : index
    %c0_2 = arith.constant 0 : index
    %c0_3 = arith.constant 0 : index
    %0 = vector.load %arg3[%c0, %c0_0, %c0_1, %c0_2, %c0_3] : memref<1x1x4x256x16xf32, #tpu.memory_space<vmem>>, vector<1x1x1x256x16xf32>
    %1 = vector.shape_cast %0 : vector<1x1x1x256x16xf32> to vector<256x16xf32>
    %c0_4 = arith.constant 0 : index
    %c0_5 = arith.constant 0 : index
    %c1 = arith.constant 1 : index
    %c0_6 = arith.constant 0 : index
    %c0_7 = arith.constant 0 : index
    %2 = vector.load %arg3[%c0_4, %c0_5, %c1, %c0_6, %c0_7] : memref<1x1x4x256x16xf32, #tpu.memory_space<vmem>>, vector<1x1x1x256x16xf32>
    %3 = vector.shape_cast %2 : vector<1x1x1x256x16xf32> to vector<256x16xf32>
    %c0_8 = arith.constant 0 : index
    %c0_9 = arith.constant 0 : index
    %c2 = arith.constant 2 : index
    %c0_10 = arith.constant 0 : index
    %c0_11 = arith.constant 0 : index
    %4 = vector.load %arg3[%c0_8, %c0_9, %c2, %c0_10, %c0_11] : memref<1x1x4x256x16xf32, #tpu.memory_space<vmem>>, vector<1x1x1x256x16xf32>
    %5 = vector.shape_cast %4 : vector<1x1x1x256x16xf32> to vector<256x16xf32>
    %c0_12 = arith.constant 0 : index
    %c0_13 = arith.constant 0 : index
    %c3 = arith.constant 3 : index
    %c0_14 = arith.constant 0 : index
    %c0_15 = arith.constant 0 : index
    %6 = vector.load %arg3[%c0_12, %c0_13, %c3, %c0_14, %c0_15] : memref<1x1x4x256x16xf32, #tpu.memory_space<vmem>>, vector<1x1x1x256x16xf32>
    %7 = vector.shape_cast %6 : vector<1x1x1x256x16xf32> to vector<256x16xf32>
    %8 = tpu.concatenate %1, %3, %5, %7 in 1 : vector<256x16xf32>, vector<256x16xf32>, vector<256x16xf32>, vector<256x16xf32> -> vector<256x64xf32>
    %c0_16 = arith.constant 0 : index
    %c0_17 = arith.constant 0 : index
    %9 = vector.load %arg4[%c0_16, %c0_17] : memref<64x64xf32, #tpu.memory_space<vmem>>, vector<64x64xf32>
    %cst = arith.constant dense<0.000000e+00> : vector<256x64xf32>
    %10 = tpu.matmul %8, %9, %cst {dimension_numbers = #tpu.dot_dimension_numbers<[1], [0], [0], [1], [0, 0, 1, 1], [], []>, precision = #tpu.contract_precision<fp32>} : vector<256x64xf32>, vector<64x64xf32>, vector<256x64xf32> -> vector<256x64xf32>
    %11 = vector.shape_cast %10 : vector<256x64xf32> to vector<16x1x16x64xf32>
    %c0_18 = arith.constant 0 : index
    %c0_19 = arith.constant 0 : index
    %c0_20 = arith.constant 0 : index
    %c0_21 = arith.constant 0 : index
    %c0_22 = arith.constant 0 : index
    %12 = vector.load %arg5[%c0_18, %c0_19, %c0_20, %c0_21, %c0_22] : memref<1x16x1x16x64xf32, #tpu.memory_space<vmem>>, vector<1x16x1x16x64xf32>
    %13 = vector.shape_cast %12 : vector<1x16x1x16x64xf32> to vector<16x1x16x64xf32>
    %14 = vector.shape_cast %11 : vector<16x1x16x64xf32> to vector<1x16x1x16x64xf32>
    tpu.vector_store %arg5[%c0_18, %c0_19, %c0_20, %c0_21, %c0_22], %14 {strides = array<i32>} : memref<1x16x1x16x64xf32, #tpu.memory_space<vmem>>, vector<1x16x1x16x64xf32>,
    return
  }
  func.func @transform_0(%arg0: i32, %arg1: i32, %arg2: i32) -> (i32, i32, i32, i32, i32) {
    %c0_i32 = arith.constant 0 : i32
    %c0_i32_0 = arith.constant 0 : i32
    %c0_i32_1 = arith.constant 0 : i32
    return %arg0, %arg2, %c0_i32, %arg1, %c0_i32_0 : i32, i32, i32, i32, i32
  }
  func.func @transform_1(%arg0: i32, %arg1: i32, %arg2: i32) -> (i32, i32) {
    %c0_i32 = arith.constant 0 : i32
    %c0_i32_0 = arith.constant 0 : i32
    %c0_i32_1 = arith.constant 0 : i32
    return %c0_i32, %c0_i32_0 : i32, i32
  }
  func.func @transform_2(%arg0: i32, %arg1: i32, %arg2: i32) -> (i32, i32, i32, i32, i32) {
    %c0_i32 = arith.constant 0 : i32
    %c0_i32_0 = arith.constant 0 : i32
    %c0_i32_1 = arith.constant 0 : i32
    return %arg0, %arg1, %arg2, %c0_i32, %c0_i32_0 : i32, i32, i32, i32, i32
  }
}

</mosaic_0001>

<llo_original>
// kernel: tpu_custom_call.1
$region0: #{tpu_custom_call.1}
  #allocation0 [shape = 'u32[]', space=smem, size = 0x4, offset = 0x4, fixed_abs, tag = 'smem constant byte address 0x4 - core index']
  #allocation1 [shape = 'u32[72,128]{1,0:T(1,128)}', space=vmem, size = 0x9000, scoped, tag = 'internal scratch']
  #allocation4 [shape = 's32[]', space=sflag, size = 0x4, offset = 0, fixed_abs, tag = 'sflag constant byte address 0x0 - dummy sync flag']
  %s0 = inlined_call_operand.vmem [shape: f32[8,2,4,256,16], index: 0, kind: input, shape index: {}]
  %s1 = inlined_call_operand.vmem [shape: f32[64,64], index: 1, kind: input, shape index: {}]
  %s2 = inlined_call_operand.hbm [shape: f32[8,16,2,16,64], index: 2, kind: output, shape index: {}]
  %s3 = sld [smem:[#allocation0]]
  $region41: #{tpu_custom_call.1} parent=0
    _
  %s5 = ssub.s32 1, %s3
  %s6 = scalar_select 0, %s5, %s3
  $region1: #{tpu_custom_call.1} parent=0
    #allocation2 [shape = 'u8[262144]{0}', space=vmem, size = 0x40000, scoped, tag = 'output window, operand 0']
    #allocation3 [shape = 's32[2]{0}', space=sflag, size = 0x8, scoped, tag = 'scoped memory for tpu_custom_call.1']
    %7 = vsyncpa [#allocation3], 0
    %s8 = scalar_lea.sflag [#allocation3], 1
    %9 = vsyncpa %s8, 0
    loop: start=0, step=1, limit=18
    $region2: #{tpu_custom_call.1} parent=1 // loop_pre_header
      _
    $region3: #{tpu_custom_call.1} parent=1 // loop_header
      %s11 = sphi 0, %s15
      %p12 = scmp.ge.s32.totalorder %s11, 18
      %s18 = sphi 0, %s37
      %s19 = sphi 0, %s33
      %s20 = sphi 0, %s29
      %s21 = sphi 0, %s18
      %s22 = sphi 0, %s19
      %s23 = sphi 0, %s20
      %s24 = sphi 0, %s21
      %s25 = sphi 0, %s22
      %s26 = sphi 0, %s23
      %s44 = sphi 0, %s46
      %s47 = sphi 0, %s44
      %s48 = sphi 0, %s47
      %s64 = sphi 0, %s48
      %s68 = sphi 0, %s68
      %s70 = sphi 0, %s68
      %s71 = sphi 0, %s70
      %s85 = sphi 0, %s71
      %s95 = sphi 0, %s97
      %s98 = sphi 0, %s95
      %s99 = sphi 0, %s98
      %s115 = sphi 0, %s99
    $region4: #{tpu_custom_call.1} parent=1 // loop_header_branch
      %14 = sbr.rel (%p12) target = $region8
    $region5: #{tpu_custom_call.1} parent=1 // loop_body
      %s16 = ssub.s32 %s11, 1
      %s17 = ssub.s32 %s11, 2
      %s27 = sadd.s32 1, %s20
      %p28 = scmp.ge.s32.totalorder %s27, 2
      %s29 = scalar_select %p28, 0, %s27
      %s30 = sadd.s32 1, %s19
      %s31 = scalar_select %p28, %s30, %s19
      %p32 = scmp.ge.s32.totalorder %s31, 1
      %s33 = scalar_select %p32, 0, %s31
      %s34 = sadd.s32 1, %s18
      %s35 = scalar_select %p32, %s34, %s18
      %p36 = scmp.ge.s32.totalorder %s35, 8
      %s37 = scalar_select %p36, 0, %s35
      %s38 = ssub.s32 %s18, %s37
      %s39 = ssub.s32 %s20, %s29
      %s40 = sor.u32 %s38, %s39
      %s41 = ssub.s32 %s19, %s33
      %s42 = sor.u32 %s40, %s41
      %p43 = scmp.eq.s32.totalorder %s42, 0
      %s45 = sadd.s32 %s44, 1
      %s46 = scalar_select %p43, %s44, %s45
      %p49 = pneg %p43
      %p50 = scmp.eq.s32.totalorder %s11, 15
      %p51 = por %p49, %p50
      %p52 = scmp.ne.s32.totalorder %s44, %s47
      %p53 = scmp.eq.s32.totalorder %s11, 0
      %p54 = por %p52, %p53
      %p55 = scmp.ne.s32.totalorder %s44, %s47
      %p56 = scmp.eq.s32.totalorder %s16, 15
      %p57 = por %p55, %p56
      %p58 = scmp.ne.s32.totalorder %s47, %s48
      %p59 = scmp.eq.s32.totalorder %s16, 0
      %p60 = por %p58, %p59
      %p61 = scmp.ne.s32.totalorder %s47, %s48
      %p62 = scmp.eq.s32.totalorder %s17, 15
      %p63 = por %p61, %p62
      %p65 = scmp.ne.s32.totalorder %s48, %s64
      %p66 = scmp.eq.s32.totalorder %s17, 0
      %p67 = por %p65, %p66
      %s69 = sadd.s32 %s68, 1
      %p72 = scmp.eq.s32.totalorder %s11, 15
      %p73 = scmp.ne.s32.totalorder %s68, %s70
      %p74 = scmp.eq.s32.totalorder %s11, 0
      %p75 = por %p73, %p74
      %p76 = scmp.ne.s32.totalorder %s68, %s70
      %p77 = scmp.eq.s32.totalorder %s16, 15
      %p78 = por %p76, %p77
      %p79 = scmp.ne.s32.totalorder %s70, %s71
      %p80 = scmp.eq.s32.totalorder %s16, 0
      %p81 = por %p79, %p80
      %p82 = scmp.ne.s32.totalorder %s70, %s71
      %p83 = scmp.eq.s32.totalorder %s17, 15
      %p84 = por %p82, %p83
      %p86 = scmp.ne.s32.totalorder %s71, %s85
      %p87 = scmp.eq.s32.totalorder %s17, 0
      %p88 = por %p86, %p87
      %s89 = ssub.s32 %s18, %s37
      %s90 = ssub.s32 %s19, %s33
      %s91 = sor.u32 %s89, %s90
      %s92 = ssub.s32 %s20, %s29
      %s93 = sor.u32 %s91, %s92
      %p94 = scmp.eq.s32.totalorder %s93, 0
      %s96 = sadd.s32 %s95, 1
      %s97 = scalar_select %p94, %s95, %s96
      %p100 = pneg %p94
      %p101 = scmp.eq.s32.totalorder %s11, 15
      %p102 = por %p100, %p101
      %p103 = scmp.ne.s32.totalorder %s95, %s98
      %p104 = scmp.eq.s32.totalorder %s11, 0
      %p105 = por %p103, %p104
      %p106 = scmp.ne.s32.totalorder %s95, %s98
      %p107 = scmp.eq.s32.totalorder %s16, 15
      %p108 = por %p106, %p107
      %p109 = scmp.ne.s32.totalorder %s98, %s99
      %p110 = scmp.eq.s32.totalorder %s16, 0
      %p111 = por %p109, %p110
      %p112 = scmp.ne.s32.totalorder %s98, %s99
      %p113 = scmp.eq.s32.totalorder %s17, 15
      %p114 = por %p112, %p113
      %p116 = scmp.ne.s32.totalorder %s99, %s115
      %p117 = scmp.eq.s32.totalorder %s17, 0
      %p118 = por %p116, %p117
      %p119 = scmp.le.s32.totalorder 1, %s11
      %p120 = scmp.lt.s32.totalorder %s11, 17
      %p121 = pnand %p119, %p120
      %p122 = pneg %p121
      // Predicated region
      $region9: #{tpu_custom_call.1} parent=5 // pred_check
        _
      $region10: #{tpu_custom_call.1} parent=5 // pred_check_branch
        %124 = sbr.rel (%p121) target = $region12
      $region11: #{tpu_custom_call.1} parent=5 // pred_region
        %s125 = ssub.s32 %s11, 1
        // Predicated region
        $region13: #{tpu_custom_call.1} parent=11 // pred_check
          %p126 = pneg %p81
        $region14: #{tpu_custom_call.1} parent=11 // pred_check_branch
          %128 = sbr.rel (%p126) target = $region16
        $region15: #{tpu_custom_call.1} parent=11 // pred_region
          _
        $region16: #{tpu_custom_call.1} parent=11 // pred_fallthru
          _
      $region12: #{tpu_custom_call.1} parent=5 // pred_fallthru
        _
      %p129 = scmp.lt.s32.totalorder %s11, 16
      // Predicated region
      $region17: #{tpu_custom_call.1} parent=5 // pred_check
        %p130 = pneg %p129
      $region18: #{tpu_custom_call.1} parent=5 // pred_check_branch
        %132 = sbr.rel (%p130) target = $region20
      $region19: #{tpu_custom_call.1} parent=5 // pred_region
        // Predicated region
        $region21: #{tpu_custom_call.1} parent=19 // pred_check
          %p133 = pneg %p54
        $region22: #{tpu_custom_call.1} parent=19 // pred_check_branch
          %135 = sbr.rel (%p133) target = $region24
        $region23: #{tpu_custom_call.1} parent=19 // pred_region
          %s136 = smul.u32 32, %s19
          %p137 = scmp.lt.s32.totalorder %s18, 7
          %s138 = scalar_select %p137, %s18, 7
          %p139 = scmp.lt.s32.totalorder %s20, 1
          %s140 = scalar_select %p139, %s20, 1
          %p141 = scmp.lt.s32.totalorder %s136, 31
          %s142 = scalar_select %p141, %s136, 31
          %s143 = smul.addr %s140, 128
          %s144 = sadd.s32 %s142, %s143
          %s145 = smul.addr %s138, 256
          %s146 = sadd.s32 %s144, %s145
          %s147 = smul.addr %s146, 8
          %s148 = scalar_lea.vmem %s0, %s147
          %s149 = smul.u32 32, %s19
        $region24: #{tpu_custom_call.1} parent=19 // pred_fallthru
          _
      $region20: #{tpu_custom_call.1} parent=5 // pred_fallthru
        _
      %p150 = scmp.le.s32.totalorder 1, %s11
      %p151 = scmp.lt.s32.totalorder %s11, 17
      %p152 = pnand %p150, %p151
      %p153 = pneg %p152
      // Predicated region
      $region25: #{tpu_custom_call.1} parent=5 // pred_check
        _
      $region26: #{tpu_custom_call.1} parent=5 // pred_check_branch
        %155 = sbr.rel (%p152) target = $region28
      $region27: #{tpu_custom_call.1} parent=5 // pred_region
        %s156 = ssub.s32 %s11, 1
        %s157 = smul.u32 32, %s22
        %p158 = scmp.lt.s32.totalorder %s21, 7
        %s159 = scalar_select %p158, %s21, 7
        %p160 = scmp.lt.s32.totalorder %s23, 1
        %s161 = scalar_select %p160, %s23, 1
        %p162 = scmp.lt.s32.totalorder %s157, 31
        %s163 = scalar_select %p162, %s157, 31
        %s164 = smul.addr %s161, 128
        %s165 = sadd.s32 %s163, %s164
        %s166 = smul.addr %s159, 256
        %s167 = sadd.s32 %s165, %s166
        %s168 = smul.addr %s167, 8
        %s169 = scalar_lea.vmem %s0, %s168
        %p170 = pneg %p60
        %p171 = pneg %p57
        %p172 = pneg %p81
        %p173 = pneg %p78
        %p174 = pneg %p111
        %p175 = pneg %p108
        %s176 = sand.u32 %s98, 1
        %s177 = scalar_lea.sflag [#allocation3], %s176
        %s178 = sand.u32 %s98, 1
        %s179 = smul.addr %s178, 256
        %s180 = scalar_lea.vmem [#allocation2], %s179
        %s181 = smul.u32 32, %s22
        %p182 = scmp.lt.s32.totalorder %s21, 7
        %s183 = scalar_select %p182, %s21, 7
        %p184 = scmp.lt.s32.totalorder %s23, 1
        %s185 = scalar_select %p184, %s23, 1
        %p186 = scmp.lt.s32.totalorder %s181, 31
        %s187 = scalar_select %p186, %s181, 31
        %s188 = smul.addr %s185, 128
        %s189 = sadd.s32 %s187, %s188
        %s190 = smul.addr %s183, 256
        %s191 = sadd.s32 %s189, %s190
        %s192 = smul.addr %s191, 8
        %s193 = scalar_lea.vmem %s0, %s192
        %s194 = smul.u32 32, %s22
        %s195 = smul.u32 16, %s22
        %v196 = vld [vmem:[%s193] sm:$0xff]
        %v197 = vld [vmem:[%s193 + $0x8] sm:$0xff]
        %v198 = vld [vmem:[%s193 + $0x10] sm:$0xff]
        %v199 = vld [vmem:[%s193 + $0x18] sm:$0xff]
        %v200 = vld [vmem:[%s193 + $0x20] sm:$0xff]
        %v201 = vld [vmem:[%s193 + $0x28] sm:$0xff]
        %v202 = vld [vmem:[%s193 + $0x30] sm:$0xff]
        %v203 = vld [vmem:[%s193 + $0x38] sm:$0xff]
        %v204 = vld [vmem:[%s193 + $0x40] sm:$0xff]
        %v205 = vld [vmem:[%s193 + $0x48] sm:$0xff]
        %v206 = vld [vmem:[%s193 + $0x50] sm:$0xff]
        %v207 = vld [vmem:[%s193 + $0x58] sm:$0xff]
        %v208 = vld [vmem:[%s193 + $0x60] sm:$0xff]
        %v209 = vld [vmem:[%s193 + $0x68] sm:$0xff]
        %v210 = vld [vmem:[%s193 + $0x70] sm:$0xff]
        %v211 = vld [vmem:[%s193 + $0x78] sm:$0xff]
        %v212 = vld [vmem:[%s193 + $0x80] sm:$0xff]
        %v213 = vld [vmem:[%s193 + $0x88] sm:$0xff]
        %v214 = vld [vmem:[%s193 + $0x90] sm:$0xff]
        %v215 = vld [vmem:[%s193 + $0x98] sm:$0xff]
        %v216 = vld [vmem:[%s193 + $0xa0] sm:$0xff]
        %v217 = vld [vmem:[%s193 + $0xa8] sm:$0xff]
        %v218 = vld [vmem:[%s193 + $0xb0] sm:$0xff]
        %v219 = vld [vmem:[%s193 + $0xb8] sm:$0xff]
        %v220 = vld [vmem:[%s193 + $0xc0] sm:$0xff]
        %v221 = vld [vmem:[%s193 + $0xc8] sm:$0xff]
        %v222 = vld [vmem:[%s193 + $0xd0] sm:$0xff]
        %v223 = vld [vmem:[%s193 + $0xd8] sm:$0xff]
        %v224 = vld [vmem:[%s193 + $0xe0] sm:$0xff]
        %v225 = vld [vmem:[%s193 + $0xe8] sm:$0xff]
        %v226 = vld [vmem:[%s193 + $0xf0] sm:$0xff]
        %v227 = vld [vmem:[%s193 + $0xf8] sm:$0xff]
        %s228 = scalar_lea.vmem %s193, 256
        %v229 = vld [vmem:[%s228] sm:$0xff]
        %v230 = vld [vmem:[%s228 + $0x8] sm:$0xff]
        %v231 = vld [vmem:[%s228 + $0x10] sm:$0xff]
        %v232 = vld [vmem:[%s228 + $0x18] sm:$0xff]
        %v233 = vld [vmem:[%s228 + $0x20] sm:$0xff]
        %v234 = vld [vmem:[%s228 + $0x28] sm:$0xff]
        %v235 = vld [vmem:[%s228 + $0x30] sm:$0xff]
        %v236 = vld [vmem:[%s228 + $0x38] sm:$0xff]
        %v237 = vld [vmem:[%s228 + $0x40] sm:$0xff]
        %v238 = vld [vmem:[%s228 + $0x48] sm:$0xff]
        %v239 = vld [vmem:[%s228 + $0x50] sm:$0xff]
        %v240 = vld [vmem:[%s228 + $0x58] sm:$0xff]
        %v241 = vld [vmem:[%s228 + $0x60] sm:$0xff]
        %v242 = vld [vmem:[%s228 + $0x68] sm:$0xff]
        %v243 = vld [vmem:[%s228 + $0x70] sm:$0xff]
        %v244 = vld [vmem:[%s228 + $0x78] sm:$0xff]
        %v245 = vld [vmem:[%s228 + $0x80] sm:$0xff]
        %v246 = vld [vmem:[%s228 + $0x88] sm:$0xff]
        %v247 = vld [vmem:[%s228 + $0x90] sm:$0xff]
        %v248 = vld [vmem:[%s228 + $0x98] sm:$0xff]
        %v249 = vld [vmem:[%s228 + $0xa0] sm:$0xff]
        %v250 = vld [vmem:[%s228 + $0xa8] sm:$0xff]
        %v251 = vld [vmem:[%s228 + $0xb0] sm:$0xff]
        %v252 = vld [vmem:[%s228 + $0xb8] sm:$0xff]
        %v253 = vld [vmem:[%s228 + $0xc0] sm:$0xff]
        %v254 = vld [vmem:[%s228 + $0xc8] sm:$0xff]
        %v255 = vld [vmem:[%s228 + $0xd0] sm:$0xff]
        %v256 = vld [vmem:[%s228 + $0xd8] sm:$0xff]
        %v257 = vld [vmem:[%s228 + $0xe0] sm:$0xff]
        %v258 = vld [vmem:[%s228 + $0xe8] sm:$0xff]
        %v259 = vld [vmem:[%s228 + $0xf0] sm:$0xff]
        %v260 = vld [vmem:[%s228 + $0xf8] sm:$0xff]
        %s261 = scalar_lea.vmem %s193, 512
        %v262 = vld [vmem:[%s261] sm:$0xff]
        %v263 = vld [vmem:[%s261 + $0x8] sm:$0xff]
        %v264 = vld [vmem:[%s261 + $0x10] sm:$0xff]
        %v265 = vld [vmem:[%s261 + $0x18] sm:$0xff]
        %v266 = vld [vmem:[%s261 + $0x20] sm:$0xff]
        %v267 = vld [vmem:[%s261 + $0x28] sm:$0xff]
        %v268 = vld [vmem:[%s261 + $0x30] sm:$0xff]
        %v269 = vld [vmem:[%s261 + $0x38] sm:$0xff]
        %v270 = vld [vmem:[%s261 + $0x40] sm:$0xff]
        %v271 = vld [vmem:[%s261 + $0x48] sm:$0xff]
        %v272 = vld [vmem:[%s261 + $0x50] sm:$0xff]
        %v273 = vld [vmem:[%s261 + $0x58] sm:$0xff]
        %v274 = vld [vmem:[%s261 + $0x60] sm:$0xff]
        %v275 = vld [vmem:[%s261 + $0x68] sm:$0xff]
        %v276 = vld [vmem:[%s261 + $0x70] sm:$0xff]
        %v277 = vld [vmem:[%s261 + $0x78] sm:$0xff]
        %v278 = vld [vmem:[%s261 + $0x80] sm:$0xff]
        %v279 = vld [vmem:[%s261 + $0x88] sm:$0xff]
        %v280 = vld [vmem:[%s261 + $0x90] sm:$0xff]
        %v281 = vld [vmem:[%s261 + $0x98] sm:$0xff]
        %v282 = vld [vmem:[%s261 + $0xa0] sm:$0xff]
        %v283 = vld [vmem:[%s261 + $0xa8] sm:$0xff]
        %v284 = vld [vmem:[%s261 + $0xb0] sm:$0xff]
        %v285 = vld [vmem:[%s261 + $0xb8] sm:$0xff]
        %v286 = vld [vmem:[%s261 + $0xc0] sm:$0xff]
        %v287 = vld [vmem:[%s261 + $0xc8] sm:$0xff]
        %v288 = vld [vmem:[%s261 + $0xd0] sm:$0xff]
        %v289 = vld [vmem:[%s261 + $0xd8] sm:$0xff]
        %v290 = vld [vmem:[%s261 + $0xe0] sm:$0xff]
        %v291 = vld [vmem:[%s261 + $0xe8] sm:$0xff]
        %v292 = vld [vmem:[%s261 + $0xf0] sm:$0xff]
        %v293 = vld [vmem:[%s261 + $0xf8] sm:$0xff]
        %s294 = scalar_lea.vmem %s193, 768
        %v295 = vld [vmem:[%s294] sm:$0xff]
        %v296 = vld [vmem:[%s294 + $0x8] sm:$0xff]
        %v297 = vld [vmem:[%s294 + $0x10] sm:$0xff]
        %v298 = vld [vmem:[%s294 + $0x18] sm:$0xff]
        %v299 = vld [vmem:[%s294 + $0x20] sm:$0xff]
        %v300 = vld [vmem:[%s294 + $0x28] sm:$0xff]
        %v301 = vld [vmem:[%s294 + $0x30] sm:$0xff]
        %v302 = vld [vmem:[%s294 + $0x38] sm:$0xff]
        %v303 = vld [vmem:[%s294 + $0x40] sm:$0xff]
        %v304 = vld [vmem:[%s294 + $0x48] sm:$0xff]
        %v305 = vld [vmem:[%s294 + $0x50] sm:$0xff]
        %v306 = vld [vmem:[%s294 + $0x58] sm:$0xff]
        %v307 = vld [vmem:[%s294 + $0x60] sm:$0xff]
        %v308 = vld [vmem:[%s294 + $0x68] sm:$0xff]
        %v309 = vld [vmem:[%s294 + $0x70] sm:$0xff]
        %v310 = vld [vmem:[%s294 + $0x78] sm:$0xff]
        %v311 = vld [vmem:[%s294 + $0x80] sm:$0xff]
        %v312 = vld [vmem:[%s294 + $0x88] sm:$0xff]
        %v313 = vld [vmem:[%s294 + $0x90] sm:$0xff]
        %v314 = vld [vmem:[%s294 + $0x98] sm:$0xff]
        %v315 = vld [vmem:[%s294 + $0xa0] sm:$0xff]
        %v316 = vld [vmem:[%s294 + $0xa8] sm:$0xff]
        %v317 = vld [vmem:[%s294 + $0xb0] sm:$0xff]
        %v318 = vld [vmem:[%s294 + $0xb8] sm:$0xff]
        %v319 = vld [vmem:[%s294 + $0xc0] sm:$0xff]
        %v320 = vld [vmem:[%s294 + $0xc8] sm:$0xff]
        %v321 = vld [vmem:[%s294 + $0xd0] sm:$0xff]
        %v322 = vld [vmem:[%s294 + $0xd8] sm:$0xff]
        %v323 = vld [vmem:[%s294 + $0xe0] sm:$0xff]
        %v324 = vld [vmem:[%s294 + $0xe8] sm:$0xff]
        %v325 = vld [vmem:[%s294 + $0xf0] sm:$0xff]
        %v326 = vld [vmem:[%s294 + $0xf8] sm:$0xff]
        %359 = vrot.lane.b32.xlu0 %v229, 16
        %v360 = vpop.permute.xlu0 %359
        %361 = vrot.lane.b32.xlu0 %v230, 16
        %v362 = vpop.permute.xlu0 %361
        %363 = vrot.lane.b32.xlu0 %v231, 16
        %v364 = vpop.permute.xlu0 %363
        %365 = vrot.lane.b32.xlu0 %v232, 16
        %v366 = vpop.permute.xlu0 %365
        %367 = vrot.lane.b32.xlu0 %v233, 16
        %v368 = vpop.permute.xlu0 %367
        %369 = vrot.lane.b32.xlu0 %v234, 16
        %v370 = vpop.permute.xlu0 %369
        %371 = vrot.lane.b32.xlu0 %v235, 16
        %v372 = vpop.permute.xlu0 %371
        %373 = vrot.lane.b32.xlu0 %v236, 16
        %v374 = vpop.permute.xlu0 %373
        %375 = vrot.lane.b32.xlu0 %v237, 16
        %v376 = vpop.permute.xlu0 %375
        %377 = vrot.lane.b32.xlu0 %v238, 16
        %v378 = vpop.permute.xlu0 %377
        %379 = vrot.lane.b32.xlu0 %v239, 16
        %v380 = vpop.permute.xlu0 %379
        %381 = vrot.lane.b32.xlu0 %v240, 16
        %v382 = vpop.permute.xlu0 %381
        %383 = vrot.lane.b32.xlu0 %v241, 16
        %v384 = vpop.permute.xlu0 %383
        %385 = vrot.lane.b32.xlu0 %v242, 16
        %v386 = vpop.permute.xlu0 %385
        %387 = vrot.lane.b32.xlu0 %v243, 16
        %v388 = vpop.permute.xlu0 %387
        %389 = vrot.lane.b32.xlu0 %v244, 16
        %v390 = vpop.permute.xlu0 %389
        %391 = vrot.lane.b32.xlu0 %v245, 16
        %v392 = vpop.permute.xlu0 %391
        %393 = vrot.lane.b32.xlu0 %v246, 16
        %v394 = vpop.permute.xlu0 %393
        %395 = vrot.lane.b32.xlu0 %v247, 16
        %v396 = vpop.permute.xlu0 %395
        %397 = vrot.lane.b32.xlu0 %v248, 16
        %v398 = vpop.permute.xlu0 %397
        %399 = vrot.lane.b32.xlu0 %v249, 16
        %v400 = vpop.permute.xlu0 %399
        %401 = vrot.lane.b32.xlu0 %v250, 16
        %v402 = vpop.permute.xlu0 %401
        %403 = vrot.lane.b32.xlu0 %v251, 16
        %v404 = vpop.permute.xlu0 %403
        %405 = vrot.lane.b32.xlu0 %v252, 16
        %v406 = vpop.permute.xlu0 %405
        %407 = vrot.lane.b32.xlu0 %v253, 16
        %v408 = vpop.permute.xlu0 %407
        %409 = vrot.lane.b32.xlu0 %v254, 16
        %v410 = vpop.permute.xlu0 %409
        %411 = vrot.lane.b32.xlu0 %v255, 16
        %v412 = vpop.permute.xlu0 %411
        %413 = vrot.lane.b32.xlu0 %v256, 16
        %v414 = vpop.permute.xlu0 %413
        %415 = vrot.lane.b32.xlu0 %v257, 16
        %v416 = vpop.permute.xlu0 %415
        %417 = vrot.lane.b32.xlu0 %v258, 16
        %v418 = vpop.permute.xlu0 %417
        %419 = vrot.lane.b32.xlu0 %v259, 16
        %v420 = vpop.permute.xlu0 %419
        %421 = vrot.lane.b32.xlu0 %v260, 16
        %v422 = vpop.permute.xlu0 %421
        %487 = vrot.lane.b32.xlu0 %v262, 32
        %v488 = vpop.permute.xlu0 %487
        %489 = vrot.lane.b32.xlu0 %v263, 32
        %v490 = vpop.permute.xlu0 %489
        %491 = vrot.lane.b32.xlu0 %v264, 32
        %v492 = vpop.permute.xlu0 %491
        %493 = vrot.lane.b32.xlu0 %v265, 32
        %v494 = vpop.permute.xlu0 %493
        %495 = vrot.lane.b32.xlu0 %v266, 32
        %v496 = vpop.permute.xlu0 %495
        %497 = vrot.lane.b32.xlu0 %v267, 32
        %v498 = vpop.permute.xlu0 %497
        %499 = vrot.lane.b32.xlu0 %v268, 32
        %v500 = vpop.permute.xlu0 %499
        %501 = vrot.lane.b32.xlu0 %v269, 32
        %v502 = vpop.permute.xlu0 %501
        %503 = vrot.lane.b32.xlu0 %v270, 32
        %v504 = vpop.permute.xlu0 %503
        %505 = vrot.lane.b32.xlu0 %v271, 32
        %v506 = vpop.permute.xlu0 %505
        %507 = vrot.lane.b32.xlu0 %v272, 32
        %v508 = vpop.permute.xlu0 %507
        %509 = vrot.lane.b32.xlu0 %v273, 32
        %v510 = vpop.permute.xlu0 %509
        %511 = vrot.lane.b32.xlu0 %v274, 32
        %v512 = vpop.permute.xlu0 %511
        %513 = vrot.lane.b32.xlu0 %v275, 32
        %v514 = vpop.permute.xlu0 %513
        %515 = vrot.lane.b32.xlu0 %v276, 32
        %v516 = vpop.permute.xlu0 %515
        %517 = vrot.lane.b32.xlu0 %v277, 32
        %v518 = vpop.permute.xlu0 %517
        %519 = vrot.lane.b32.xlu0 %v278, 32
        %v520 = vpop.permute.xlu0 %519
        %521 = vrot.lane.b32.xlu0 %v279, 32
        %v522 = vpop.permute.xlu0 %521
        %523 = vrot.lane.b32.xlu0 %v280, 32
        %v524 = vpop.permute.xlu0 %523
        %525 = vrot.lane.b32.xlu0 %v281, 32
        %v526 = vpop.permute.xlu0 %525
        %527 = vrot.lane.b32.xlu0 %v282, 32
        %v528 = vpop.permute.xlu0 %527
        %529 = vrot.lane.b32.xlu0 %v283, 32
        %v530 = vpop.permute.xlu0 %529
        %531 = vrot.lane.b32.xlu0 %v284, 32
        %v532 = vpop.permute.xlu0 %531
        %533 = vrot.lane.b32.xlu0 %v285, 32
        %v534 = vpop.permute.xlu0 %533
        %535 = vrot.lane.b32.xlu0 %v286, 32
        %v536 = vpop.permute.xlu0 %535
        %537 = vrot.lane.b32.xlu0 %v287, 32
        %v538 = vpop.permute.xlu0 %537
        %539 = vrot.lane.b32.xlu0 %v288, 32
        %v540 = vpop.permute.xlu0 %539
        %541 = vrot.lane.b32.xlu0 %v289, 32
        %v542 = vpop.permute.xlu0 %541
        %543 = vrot.lane.b32.xlu0 %v290, 32
        %v544 = vpop.permute.xlu0 %543
        %545 = vrot.lane.b32.xlu0 %v291, 32
        %v546 = vpop.permute.xlu0 %545
        %547 = vrot.lane.b32.xlu0 %v292, 32
        %v548 = vpop.permute.xlu0 %547
        %549 = vrot.lane.b32.xlu0 %v293, 32
        %v550 = vpop.permute.xlu0 %549
        %615 = vrot.lane.b32.xlu0 %v295, 48
        %v616 = vpop.permute.xlu0 %615
        %617 = vrot.lane.b32.xlu0 %v296, 48
        %v618 = vpop.permute.xlu0 %617
        %619 = vrot.lane.b32.xlu0 %v297, 48
        %v620 = vpop.permute.xlu0 %619
        %621 = vrot.lane.b32.xlu0 %v298, 48
        %v622 = vpop.permute.xlu0 %621
        %623 = vrot.lane.b32.xlu0 %v299, 48
        %v624 = vpop.permute.xlu0 %623
        %625 = vrot.lane.b32.xlu0 %v300, 48
        %v626 = vpop.permute.xlu0 %625
        %627 = vrot.lane.b32.xlu0 %v301, 48
        %v628 = vpop.permute.xlu0 %627
        %629 = vrot.lane.b32.xlu0 %v302, 48
        %v630 = vpop.permute.xlu0 %629
        %631 = vrot.lane.b32.xlu0 %v303, 48
        %v632 = vpop.permute.xlu0 %631
        %633 = vrot.lane.b32.xlu0 %v304, 48
        %v634 = vpop.permute.xlu0 %633
        %635 = vrot.lane.b32.xlu0 %v305, 48
        %v636 = vpop.permute.xlu0 %635
        %637 = vrot.lane.b32.xlu0 %v306, 48
        %v638 = vpop.permute.xlu0 %637
        %639 = vrot.lane.b32.xlu0 %v307, 48
        %v640 = vpop.permute.xlu0 %639
        %641 = vrot.lane.b32.xlu0 %v308, 48
        %v642 = vpop.permute.xlu0 %641
        %643 = vrot.lane.b32.xlu0 %v309, 48
        %v644 = vpop.permute.xlu0 %643
        %645 = vrot.lane.b32.xlu0 %v310, 48
        %v646 = vpop.permute.xlu0 %645
        %647 = vrot.lane.b32.xlu0 %v311, 48
        %v648 = vpop.permute.xlu0 %647
        %649 = vrot.lane.b32.xlu0 %v312, 48
        %v650 = vpop.permute.xlu0 %649
        %651 = vrot.lane.b32.xlu0 %v313, 48
        %v652 = vpop.permute.xlu0 %651
        %653 = vrot.lane.b32.xlu0 %v314, 48
        %v654 = vpop.permute.xlu0 %653
        %655 = vrot.lane.b32.xlu0 %v315, 48
        %v656 = vpop.permute.xlu0 %655
        %657 = vrot.lane.b32.xlu0 %v316, 48
        %v658 = vpop.permute.xlu0 %657
        %659 = vrot.lane.b32.xlu0 %v317, 48
        %v660 = vpop.permute.xlu0 %659
        %661 = vrot.lane.b32.xlu0 %v318, 48
        %v662 = vpop.permute.xlu0 %661
        %663 = vrot.lane.b32.xlu0 %v319, 48
        %v664 = vpop.permute.xlu0 %663
        %665 = vrot.lane.b32.xlu0 %v320, 48
        %v666 = vpop.permute.xlu0 %665
        %667 = vrot.lane.b32.xlu0 %v321, 48
        %v668 = vpop.permute.xlu0 %667
        %669 = vrot.lane.b32.xlu0 %v322, 48
        %v670 = vpop.permute.xlu0 %669
        %671 = vrot.lane.b32.xlu0 %v323, 48
        %v672 = vpop.permute.xlu0 %671
        %673 = vrot.lane.b32.xlu0 %v324, 48
        %v674 = vpop.permute.xlu0 %673
        %675 = vrot.lane.b32.xlu0 %v325, 48
        %v676 = vpop.permute.xlu0 %675
        %677 = vrot.lane.b32.xlu0 %v326, 48
        %v678 = vpop.permute.xlu0 %677
        %vm711 = vcmask 130048
        %v712 = vsel %vm711, %v196, %v360
        %v713 = vsel %vm711, %v197, %v362
        %v714 = vsel %vm711, %v198, %v364
        %v715 = vsel %vm711, %v199, %v366
        %v716 = vsel %vm711, %v200, %v368
        %v717 = vsel %vm711, %v201, %v370
        %v718 = vsel %vm711, %v202, %v372
        %v719 = vsel %vm711, %v203, %v374
        %v720 = vsel %vm711, %v204, %v376
        %v721 = vsel %vm711, %v205, %v378
        %v722 = vsel %vm711, %v206, %v380
        %v723 = vsel %vm711, %v207, %v382
        %v724 = vsel %vm711, %v208, %v384
        %v725 = vsel %vm711, %v209, %v386
        %v726 = vsel %vm711, %v210, %v388
        %v727 = vsel %vm711, %v211, %v390
        %v728 = vsel %vm711, %v212, %v392
        %v729 = vsel %vm711, %v213, %v394
        %v730 = vsel %vm711, %v214, %v396
        %v731 = vsel %vm711, %v215, %v398
        %v732 = vsel %vm711, %v216, %v400
        %v733 = vsel %vm711, %v217, %v402
        %v734 = vsel %vm711, %v218, %v404
        %v735 = vsel %vm711, %v219, %v406
        %v736 = vsel %vm711, %v220, %v408
        %v737 = vsel %vm711, %v221, %v410
        %v738 = vsel %vm711, %v222, %v412
        %v739 = vsel %vm711, %v223, %v414
        %v740 = vsel %vm711, %v224, %v416
        %v741 = vsel %vm711, %v225, %v418
        %v742 = vsel %vm711, %v226, %v420
        %v743 = vsel %vm711, %v227, %v422
        %vm744 = vcmask 261120
        %v745 = vsel %vm744, %v712, %v488
        %v746 = vsel %vm744, %v713, %v490
        %v747 = vsel %vm744, %v714, %v492
        %v748 = vsel %vm744, %v715, %v494
        %v749 = vsel %vm744, %v716, %v496
        %v750 = vsel %vm744, %v717, %v498
        %v751 = vsel %vm744, %v718, %v500
        %v752 = vsel %vm744, %v719, %v502
        %v753 = vsel %vm744, %v720, %v504
        %v754 = vsel %vm744, %v721, %v506
        %v755 = vsel %vm744, %v722, %v508
        %v756 = vsel %vm744, %v723, %v510
        %v757 = vsel %vm744, %v724, %v512
        %v758 = vsel %vm744, %v725, %v514
        %v759 = vsel %vm744, %v726, %v516
        %v760 = vsel %vm744, %v727, %v518
        %v761 = vsel %vm744, %v728, %v520
        %v762 = vsel %vm744, %v729, %v522
        %v763 = vsel %vm744, %v730, %v524
        %v764 = vsel %vm744, %v731, %v526
        %v765 = vsel %vm744, %v732, %v528
        %v766 = vsel %vm744, %v733, %v530
        %v767 = vsel %vm744, %v734, %v532
        %v768 = vsel %vm744, %v735, %v534
        %v769 = vsel %vm744, %v736, %v536
        %v770 = vsel %vm744, %v737, %v538
        %v771 = vsel %vm744, %v738, %v540
        %v772 = vsel %vm744, %v739, %v542
        %v773 = vsel %vm744, %v740, %v544
        %v774 = vsel %vm744, %v741, %v546
        %v775 = vsel %vm744, %v742, %v548
        %v776 = vsel %vm744, %v743, %v550
        %vm777 = vcmask 392192
        %v778 = vsel %vm777, %v745, %v616
        %v779 = vsel %vm777, %v746, %v618
        %v780 = vsel %vm777, %v747, %v620
        %v781 = vsel %vm777, %v748, %v622
        %v782 = vsel %vm777, %v749, %v624
        %v783 = vsel %vm777, %v750, %v626
        %v784 = vsel %vm777, %v751, %v628
        %v785 = vsel %vm777, %v752, %v630
        %v786 = vsel %vm777, %v753, %v632
        %v787 = vsel %vm777, %v754, %v634
        %v788 = vsel %vm777, %v755, %v636
        %v789 = vsel %vm777, %v756, %v638
        %v790 = vsel %vm777, %v757, %v640
        %v791 = vsel %vm777, %v758, %v642
        %v792 = vsel %vm777, %v759, %v644
        %v793 = vsel %vm777, %v760, %v646
        %v794 = vsel %vm777, %v761, %v648
        %v795 = vsel %vm777, %v762, %v650
        %v796 = vsel %vm777, %v763, %v652
        %v797 = vsel %vm777, %v764, %v654
        %v798 = vsel %vm777, %v765, %v656
        %v799 = vsel %vm777, %v766, %v658
        %v800 = vsel %vm777, %v767, %v660
        %v801 = vsel %vm777, %v768, %v662
        %v802 = vsel %vm777, %v769, %v664
        %v803 = vsel %vm777, %v770, %v666
        %v804 = vsel %vm777, %v771, %v668
        %v805 = vsel %vm777, %v772, %v670
        %v806 = vsel %vm777, %v773, %v672
        %v807 = vsel %vm777, %v774, %v674
        %v808 = vsel %vm777, %v775, %v676
        %v809 = vsel %vm777, %v776, %v678
        %v810 = vld [vmem:[%s1] sm:$0xff]
        %v811 = vld [vmem:[%s1 + $0x8] sm:$0xff]
        %v812 = vld [vmem:[%s1 + $0x10] sm:$0xff]
        %v813 = vld [vmem:[%s1 + $0x18] sm:$0xff]
        %v814 = vld [vmem:[%s1 + $0x20] sm:$0xff]
        %v815 = vld [vmem:[%s1 + $0x28] sm:$0xff]
        %v816 = vld [vmem:[%s1 + $0x30] sm:$0xff]
        %v817 = vld [vmem:[%s1 + $0x38] sm:$0xff]
        %vm818 = vcmask 523264
        %v820 = vsel %vm818, %v778, 0
        %v823 = vsel %vm818, %v779, 0
        %v826 = vsel %vm818, %v780, 0
        %v829 = vsel %vm818, %v781, 0
        %v832 = vsel %vm818, %v782, 0
        %v835 = vsel %vm818, %v783, 0
        %v838 = vsel %vm818, %v784, 0
        %v841 = vsel %vm818, %v785, 0
        %v844 = vsel %vm818, %v786, 0
        %v847 = vsel %vm818, %v787, 0
        %v850 = vsel %vm818, %v788, 0
        %v853 = vsel %vm818, %v789, 0
        %v856 = vsel %vm818, %v790, 0
        %v859 = vsel %vm818, %v791, 0
        %v862 = vsel %vm818, %v792, 0
        %v865 = vsel %vm818, %v793, 0
        %v868 = vsel %vm818, %v794, 0
        %v871 = vsel %vm818, %v795, 0
        %v874 = vsel %vm818, %v796, 0
        %v877 = vsel %vm818, %v797, 0
        %v880 = vsel %vm818, %v798, 0
        %v883 = vsel %vm818, %v799, 0
        %v886 = vsel %vm818, %v800, 0
        %v889 = vsel %vm818, %v801, 0
        %v892 = vsel %vm818, %v802, 0
        %v895 = vsel %vm818, %v803, 0
        %v898 = vsel %vm818, %v804, 0
        %v901 = vsel %vm818, %v805, 0
        %v904 = vsel %vm818, %v806, 0
        %v907 = vsel %vm818, %v807, 0
        %v910 = vsel %vm818, %v808, 0
        %v913 = vsel %vm818, %v809, 0
        %915 = vmatpush.msra.mxu0 0.0
        %916 = vmatpush.msra.mxu0 0.0
        %917 = vmatpush.msra.mxu0 0.0
        %918 = vmatpush.msra.mxu0 0.0
        %919 = vmatpush.msra.mxu0 0.0
        %920 = vmatpush.msra.mxu0 0.0
        %921 = vmatpush.msra.mxu0 0.0
        %922 = vmatpush.msra.mxu0 0.0
        %v923 = vand.u32 %v817, 4294901760
        %924 = vmatpush.msra.mxu0 %v923
        %v925 = vand.u32 %v816, 4294901760
        %926 = vmatpush.msra.mxu0 %v925
        %v927 = vand.u32 %v815, 4294901760
        %928 = vmatpush.msra.mxu0 %v927
        %v929 = vand.u32 %v814, 4294901760
        %930 = vmatpush.msra.mxu0 %v929
        %v931 = vand.u32 %v813, 4294901760
        %932 = vmatpush.msra.mxu0 %v931
        %v933 = vand.u32 %v812, 4294901760
        %934 = vmatpush.msra.mxu0 %v933
        %v935 = vand.u32 %v811, 4294901760
        %936 = vmatpush.msra.mxu0 %v935
        %v937 = vand.u32 %v810, 4294901760
        %938 = vmatpush.msra.mxu0 %v937
        %v939 = vand.u32 %v820, 4294901760
        %v940 = vsub.f32 %v820, %v939
        %v941 = vand.u32 %v940, 4294901760
        %v942 = vsub.f32 %v940, %v941
        %v943 = vand.u32 %v942, 4294901760
        %944 = vmatmul.f32.gmra.mxu0 %v943
        %v945 = vpop.f32.mrf.mxu0
        %v946 = vadd.f32 0.0, %v945
        %v947 = vand.u32 %v823, 4294901760
        %v948 = vsub.f32 %v823, %v947
        %v949 = vand.u32 %v948, 4294901760
        %v950 = vsub.f32 %v948, %v949
        %v951 = vand.u32 %v950, 4294901760
        %952 = vmatmul.f32.gmra.mxu0 %v951
        %v953 = vpop.f32.mrf.mxu0
        %v954 = vadd.f32 0.0, %v953
        %v955 = vand.u32 %v826, 4294901760
        %v956 = vsub.f32 %v826, %v955
        %v957 = vand.u32 %v956, 4294901760
        %v958 = vsub.f32 %v956, %v957
        %v959 = vand.u32 %v958, 4294901760
        %960 = vmatmul.f32.gmra.mxu0 %v959
        %v961 = vpop.f32.mrf.mxu0
        %v962 = vadd.f32 0.0, %v961
        %v963 = vand.u32 %v829, 4294901760
        %v964 = vsub.f32 %v829, %v963
        %v965 = vand.u32 %v964, 4294901760
        %v966 = vsub.f32 %v964, %v965
        %v967 = vand.u32 %v966, 4294901760
        %968 = vmatmul.f32.gmra.mxu0 %v967
        %v969 = vpop.f32.mrf.mxu0
        %v970 = vadd.f32 0.0, %v969
        %v971 = vand.u32 %v832, 4294901760
        %v972 = vsub.f32 %v832, %v971
        %v973 = vand.u32 %v972, 4294901760
        %v974 = vsub.f32 %v972, %v973
        %v975 = vand.u32 %v974, 4294901760
        %976 = vmatmul.f32.gmra.mxu0 %v975
        %v977 = vpop.f32.mrf.mxu0
        %v978 = vadd.f32 0.0, %v977
        %v979 = vand.u32 %v835, 4294901760
        %v980 = vsub.f32 %v835, %v979
        %v981 = vand.u32 %v980, 4294901760
        %v982 = vsub.f32 %v980, %v981
        %v983 = vand.u32 %v982, 4294901760
        %984 = vmatmul.f32.gmra.mxu0 %v983
        %v985 = vpop.f32.mrf.mxu0
        %v986 = vadd.f32 0.0, %v985
        %v987 = vand.u32 %v838, 4294901760
        %v988 = vsub.f32 %v838, %v987
        %v989 = vand.u32 %v988, 4294901760
        %v990 = vsub.f32 %v988, %v989
        %v991 = vand.u32 %v990, 4294901760
        %992 = vmatmul.f32.gmra.mxu0 %v991
        %v993 = vpop.f32.mrf.mxu0
        %v994 = vadd.f32 0.0, %v993
        %v995 = vand.u32 %v841, 4294901760
        %v996 = vsub.f32 %v841, %v995
        %v997 = vand.u32 %v996, 4294901760
        %v998 = vsub.f32 %v996, %v997
        %v999 = vand.u32 %v998, 4294901760
        %1000 = vmatmul.f32.gmra.mxu0 %v999
        %v1001 = vpop.f32.mrf.mxu0
        %v1002 = vadd.f32 0.0, %v1001
        %v1003 = vand.u32 %v844, 4294901760
        %v1004 = vsub.f32 %v844, %v1003
        %v1005 = vand.u32 %v1004, 4294901760
        %v1006 = vsub.f32 %v1004, %v1005
        %v1007 = vand.u32 %v1006, 4294901760
        %1008 = vmatmul.f32.gmra.mxu0 %v1007
        %v1009 = vpop.f32.mrf.mxu0
        %v1010 = vadd.f32 0.0, %v1009
        %v1011 = vand.u32 %v847, 4294901760
        %v1012 = vsub.f32 %v847, %v1011
        %v1013 = vand.u32 %v1012, 4294901760
        %v1014 = vsub.f32 %v1012, %v1013
        %v1015 = vand.u32 %v1014, 4294901760
        %1016 = vmatmul.f32.gmra.mxu0 %v1015
        %v1017 = vpop.f32.mrf.mxu0
        %v1018 = vadd.f32 0.0, %v1017
        %v1019 = vand.u32 %v850, 4294901760
        %v1020 = vsub.f32 %v850, %v1019
        %v1021 = vand.u32 %v1020, 4294901760
        %v1022 = vsub.f32 %v1020, %v1021
        %v1023 = vand.u32 %v1022, 4294901760
        %1024 = vmatmul.f32.gmra.mxu0 %v1023
        %v1025 = vpop.f32.mrf.mxu0
        %v1026 = vadd.f32 0.0, %v1025
        %v1027 = vand.u32 %v853, 4294901760
        %v1028 = vsub.f32 %v853, %v1027
        %v1029 = vand.u32 %v1028, 4294901760
        %v1030 = vsub.f32 %v1028, %v1029
        %v1031 = vand.u32 %v1030, 4294901760
        %1032 = vmatmul.f32.gmra.mxu0 %v1031
        %v1033 = vpop.f32.mrf.mxu0
        %v1034 = vadd.f32 0.0, %v1033
        %v1035 = vand.u32 %v856, 4294901760
        %v1036 = vsub.f32 %v856, %v1035
        %v1037 = vand.u32 %v1036, 4294901760
        %v1038 = vsub.f32 %v1036, %v1037
        %v1039 = vand.u32 %v1038, 4294901760
        %1040 = vmatmul.f32.gmra.mxu0 %v1039
        %v1041 = vpop.f32.mrf.mxu0
        %v1042 = vadd.f32 0.0, %v1041
        %v1043 = vand.u32 %v859, 4294901760
        %v1044 = vsub.f32 %v859, %v1043
        %v1045 = vand.u32 %v1044, 4294901760
        %v1046 = vsub.f32 %v1044, %v1045
        %v1047 = vand.u32 %v1046, 4294901760
        %1048 = vmatmul.f32.gmra.mxu0 %v1047
        %v1049 = vpop.f32.mrf.mxu0
        %v1050 = vadd.f32 0.0, %v1049
        %v1051 = vand.u32 %v862, 4294901760
        %v1052 = vsub.f32 %v862, %v1051
        %v1053 = vand.u32 %v1052, 4294901760
        %v1054 = vsub.f32 %v1052, %v1053
        %v1055 = vand.u32 %v1054, 4294901760
        %1056 = vmatmul.f32.gmra.mxu0 %v1055
        %v1057 = vpop.f32.mrf.mxu0
        %v1058 = vadd.f32 0.0, %v1057
        %v1059 = vand.u32 %v865, 4294901760
        %v1060 = vsub.f32 %v865, %v1059
        %v1061 = vand.u32 %v1060, 4294901760
        %v1062 = vsub.f32 %v1060, %v1061
        %v1063 = vand.u32 %v1062, 4294901760
        %1064 = vmatmul.f32.gmra.mxu0 %v1063
        %v1065 = vpop.f32.mrf.mxu0
        %v1066 = vadd.f32 0.0, %v1065
        %v1067 = vand.u32 %v868, 4294901760
        %v1068 = vsub.f32 %v868, %v1067
        %v1069 = vand.u32 %v1068, 4294901760
        %v1070 = vsub.f32 %v1068, %v1069
        %v1071 = vand.u32 %v1070, 4294901760
        %1072 = vmatmul.f32.gmra.mxu0 %v1071
        %v1073 = vpop.f32.mrf.mxu0
        %v1074 = vadd.f32 0.0, %v1073
        %v1075 = vand.u32 %v871, 4294901760
        %v1076 = vsub.f32 %v871, %v1075
        %v1077 = vand.u32 %v1076, 4294901760
        %v1078 = vsub.f32 %v1076, %v1077
        %v1079 = vand.u32 %v1078, 4294901760
        %1080 = vmatmul.f32.gmra.mxu0 %v1079
        %v1081 = vpop.f32.mrf.mxu0
        %v1082 = vadd.f32 0.0, %v1081
        %v1083 = vand.u32 %v874, 4294901760
        %v1084 = vsub.f32 %v874, %v1083
        %v1085 = vand.u32 %v1084, 4294901760
        %v1086 = vsub.f32 %v1084, %v1085
        %v1087 = vand.u32 %v1086, 4294901760
        %1088 = vmatmul.f32.gmra.mxu0 %v1087
        %v1089 = vpop.f32.mrf.mxu0
        %v1090 = vadd.f32 0.0, %v1089
        %v1091 = vand.u32 %v877, 4294901760
        %v1092 = vsub.f32 %v877, %v1091
        %v1093 = vand.u32 %v1092, 4294901760
        %v1094 = vsub.f32 %v1092, %v1093
        %v1095 = vand.u32 %v1094, 4294901760
        %1096 = vmatmul.f32.gmra.mxu0 %v1095
        %v1097 = vpop.f32.mrf.mxu0
        %v1098 = vadd.f32 0.0, %v1097
        %v1099 = vand.u32 %v880, 4294901760
        %v1100 = vsub.f32 %v880, %v1099
        %v1101 = vand.u32 %v1100, 4294901760
        %v1102 = vsub.f32 %v1100, %v1101
        %v1103 = vand.u32 %v1102, 4294901760
        %1104 = vmatmul.f32.gmra.mxu0 %v1103
        %v1105 = vpop.f32.mrf.mxu0
        %v1106 = vadd.f32 0.0, %v1105
        %v1107 = vand.u32 %v883, 4294901760
        %v1108 = vsub.f32 %v883, %v1107
        %v1109 = vand.u32 %v1108, 4294901760
        %v1110 = vsub.f32 %v1108, %v1109
        %v1111 = vand.u32 %v1110, 4294901760
        %1112 = vmatmul.f32.gmra.mxu0 %v1111
        %v1113 = vpop.f32.mrf.mxu0
        %v1114 = vadd.f32 0.0, %v1113
        %v1115 = vand.u32 %v886, 4294901760
        %v1116 = vsub.f32 %v886, %v1115
        %v1117 = vand.u32 %v1116, 4294901760
        %v1118 = vsub.f32 %v1116, %v1117
        %v1119 = vand.u32 %v1118, 4294901760
        %1120 = vmatmul.f32.gmra.mxu0 %v1119
        %v1121 = vpop.f32.mrf.mxu0
        %v1122 = vadd.f32 0.0, %v1121
        %v1123 = vand.u32 %v889, 4294901760
        %v1124 = vsub.f32 %v889, %v1123
        %v1125 = vand.u32 %v1124, 4294901760
        %v1126 = vsub.f32 %v1124, %v1125
        %v1127 = vand.u32 %v1126, 4294901760
        %1128 = vmatmul.f32.gmra.mxu0 %v1127
        %v1129 = vpop.f32.mrf.mxu0
        %v1130 = vadd.f32 0.0, %v1129
        %v1131 = vand.u32 %v892, 4294901760
        %v1132 = vsub.f32 %v892, %v1131
        %v1133 = vand.u32 %v1132, 4294901760
        %v1134 = vsub.f32 %v1132, %v1133
        %v1135 = vand.u32 %v1134, 4294901760
        %1136 = vmatmul.f32.gmra.mxu0 %v1135
        %v1137 = vpop.f32.mrf.mxu0
        %v1138 = vadd.f32 0.0, %v1137
        %v1139 = vand.u32 %v895, 4294901760
        %v1140 = vsub.f32 %v895, %v1139
        %v1141 = vand.u32 %v1140, 4294901760
        %v1142 = vsub.f32 %v1140, %v1141
        %v1143 = vand.u32 %v1142, 4294901760
        %1144 = vmatmul.f32.gmra.mxu0 %v1143
        %v1145 = vpop.f32.mrf.mxu0
        %v1146 = vadd.f32 0.0, %v1145
        %v1147 = vand.u32 %v898, 4294901760
        %v1148 = vsub.f32 %v898, %v1147
        %v1149 = vand.u32 %v1148, 4294901760
        %v1150 = vsub.f32 %v1148, %v1149
        %v1151 = vand.u32 %v1150, 4294901760
        %1152 = vmatmul.f32.gmra.mxu0 %v1151
        %v1153 = vpop.f32.mrf.mxu0
        %v1154 = vadd.f32 0.0, %v1153
        %v1155 = vand.u32 %v901, 4294901760
        %v1156 = vsub.f32 %v901, %v1155
        %v1157 = vand.u32 %v1156, 4294901760
        %v1158 = vsub.f32 %v1156, %v1157
        %v1159 = vand.u32 %v1158, 4294901760
        %1160 = vmatmul.f32.gmra.mxu0 %v1159
        %v1161 = vpop.f32.mrf.mxu0
        %v1162 = vadd.f32 0.0, %v1161
        %v1163 = vand.u32 %v904, 4294901760
        %v1164 = vsub.f32 %v904, %v1163
        %v1165 = vand.u32 %v1164, 4294901760
        %v1166 = vsub.f32 %v1164, %v1165
        %v1167 = vand.u32 %v1166, 4294901760
        %1168 = vmatmul.f32.gmra.mxu0 %v1167
        %v1169 = vpop.f32.mrf.mxu0
        %v1170 = vadd.f32 0.0, %v1169
        %v1171 = vand.u32 %v907, 4294901760
        %v1172 = vsub.f32 %v907, %v1171
        %v1173 = vand.u32 %v1172, 4294901760
        %v1174 = vsub.f32 %v1172, %v1173
        %v1175 = vand.u32 %v1174, 4294901760
        %1176 = vmatmul.f32.gmra.mxu0 %v1175
        %v1177 = vpop.f32.mrf.mxu0
        %v1178 = vadd.f32 0.0, %v1177
        %v1179 = vand.u32 %v910, 4294901760
        %v1180 = vsub.f32 %v910, %v1179
        %v1181 = vand.u32 %v1180, 4294901760
        %v1182 = vsub.f32 %v1180, %v1181
        %v1183 = vand.u32 %v1182, 4294901760
        %1184 = vmatmul.f32.gmra.mxu0 %v1183
        %v1185 = vpop.f32.mrf.mxu0
        %v1186 = vadd.f32 0.0, %v1185
        %v1187 = vand.u32 %v913, 4294901760
        %v1188 = vsub.f32 %v913, %v1187
        %v1189 = vand.u32 %v1188, 4294901760
        %v1190 = vsub.f32 %v1188, %v1189
        %v1191 = vand.u32 %v1190, 4294901760
        %1192 = vmatmul.f32.gmra.mxu0 %v1191
        %v1193 = vpop.f32.mrf.mxu0
        %v1194 = vadd.f32 0.0, %v1193
        %1195 = vdwg.mxu0
        %1196 = vmatpush.msra.mxu0 0.0
        %1197 = vmatpush.msra.mxu0 0.0
        %1198 = vmatpush.msra.mxu0 0.0
        %1199 = vmatpush.msra.mxu0 0.0
        %1200 = vmatpush.msra.mxu0 0.0
        %1201 = vmatpush.msra.mxu0 0.0
        %1202 = vmatpush.msra.mxu0 0.0
        %1203 = vmatpush.msra.mxu0 0.0
        %v1204 = vand.u32 %v817, 4294901760
        %v1205 = vsub.f32 %v817, %v1204
        %v1206 = vand.u32 %v1205, 4294901760
        %v1207 = vsub.f32 %v1205, %v1206
        %v1208 = vand.u32 %v1207, 4294901760
        %1209 = vmatpush.msra.mxu0 %v1208
        %v1210 = vand.u32 %v816, 4294901760
        %v1211 = vsub.f32 %v816, %v1210
        %v1212 = vand.u32 %v1211, 4294901760
        %v1213 = vsub.f32 %v1211, %v1212
        %v1214 = vand.u32 %v1213, 4294901760
        %1215 = vmatpush.msra.mxu0 %v1214
        %v1216 = vand.u32 %v815, 4294901760
        %v1217 = vsub.f32 %v815, %v1216
        %v1218 = vand.u32 %v1217, 4294901760
        %v1219 = vsub.f32 %v1217, %v1218
        %v1220 = vand.u32 %v1219, 4294901760
        %1221 = vmatpush.msra.mxu0 %v1220
        %v1222 = vand.u32 %v814, 4294901760
        %v1223 = vsub.f32 %v814, %v1222
        %v1224 = vand.u32 %v1223, 4294901760
        %v1225 = vsub.f32 %v1223, %v1224
        %v1226 = vand.u32 %v1225, 4294901760
        %1227 = vmatpush.msra.mxu0 %v1226
        %v1228 = vand.u32 %v813, 4294901760
        %v1229 = vsub.f32 %v813, %v1228
        %v1230 = vand.u32 %v1229, 4294901760
        %v1231 = vsub.f32 %v1229, %v1230
        %v1232 = vand.u32 %v1231, 4294901760
        %1233 = vmatpush.msra.mxu0 %v1232
        %v1234 = vand.u32 %v812, 4294901760
        %v1235 = vsub.f32 %v812, %v1234
        %v1236 = vand.u32 %v1235, 4294901760
        %v1237 = vsub.f32 %v1235, %v1236
        %v1238 = vand.u32 %v1237, 4294901760
        %1239 = vmatpush.msra.mxu0 %v1238
        %v1240 = vand.u32 %v811, 4294901760
        %v1241 = vsub.f32 %v811, %v1240
        %v1242 = vand.u32 %v1241, 4294901760
        %v1243 = vsub.f32 %v1241, %v1242
        %v1244 = vand.u32 %v1243, 4294901760
        %1245 = vmatpush.msra.mxu0 %v1244
        %v1246 = vand.u32 %v810, 4294901760
        %v1247 = vsub.f32 %v810, %v1246
        %v1248 = vand.u32 %v1247, 4294901760
        %v1249 = vsub.f32 %v1247, %v1248
        %v1250 = vand.u32 %v1249, 4294901760
        %1251 = vmatpush.msra.mxu0 %v1250
        %v1252 = vand.u32 %v820, 4294901760
        %1253 = vmatmul.f32.gmra.mxu0 %v1252
        %v1254 = vpop.f32.mrf.mxu0
        %v1255 = vadd.f32 %v946, %v1254
        %v1256 = vand.u32 %v823, 4294901760
        %1257 = vmatmul.f32.gmra.mxu0 %v1256
        %v1258 = vpop.f32.mrf.mxu0
        %v1259 = vadd.f32 %v954, %v1258
        %v1260 = vand.u32 %v826, 4294901760
        %1261 = vmatmul.f32.gmra.mxu0 %v1260
        %v1262 = vpop.f32.mrf.mxu0
        %v1263 = vadd.f32 %v962, %v1262
        %v1264 = vand.u32 %v829, 4294901760
        %1265 = vmatmul.f32.gmra.mxu0 %v1264
        %v1266 = vpop.f32.mrf.mxu0
        %v1267 = vadd.f32 %v970, %v1266
        %v1268 = vand.u32 %v832, 4294901760
        %1269 = vmatmul.f32.gmra.mxu0 %v1268
        %v1270 = vpop.f32.mrf.mxu0
        %v1271 = vadd.f32 %v978, %v1270
        %v1272 = vand.u32 %v835, 4294901760
        %1273 = vmatmul.f32.gmra.mxu0 %v1272
        %v1274 = vpop.f32.mrf.mxu0
        %v1275 = vadd.f32 %v986, %v1274
        %v1276 = vand.u32 %v838, 4294901760
        %1277 = vmatmul.f32.gmra.mxu0 %v1276
        %v1278 = vpop.f32.mrf.mxu0
        %v1279 = vadd.f32 %v994, %v1278
        %v1280 = vand.u32 %v841, 4294901760
        %1281 = vmatmul.f32.gmra.mxu0 %v1280
        %v1282 = vpop.f32.mrf.mxu0
        %v1283 = vadd.f32 %v1002, %v1282
        %v1284 = vand.u32 %v844, 4294901760
        %1285 = vmatmul.f32.gmra.mxu0 %v1284
        %v1286 = vpop.f32.mrf.mxu0
        %v1287 = vadd.f32 %v1010, %v1286
        %v1288 = vand.u32 %v847, 4294901760
        %1289 = vmatmul.f32.gmra.mxu0 %v1288
        %v1290 = vpop.f32.mrf.mxu0
        %v1291 = vadd.f32 %v1018, %v1290
        %v1292 = vand.u32 %v850, 4294901760
        %1293 = vmatmul.f32.gmra.mxu0 %v1292
        %v1294 = vpop.f32.mrf.mxu0
        %v1295 = vadd.f32 %v1026, %v1294
        %v1296 = vand.u32 %v853, 4294901760
        %1297 = vmatmul.f32.gmra.mxu0 %v1296
        %v1298 = vpop.f32.mrf.mxu0
        %v1299 = vadd.f32 %v1034, %v1298
        %v1300 = vand.u32 %v856, 4294901760
        %1301 = vmatmul.f32.gmra.mxu0 %v1300
        %v1302 = vpop.f32.mrf.mxu0
        %v1303 = vadd.f32 %v1042, %v1302
        %v1304 = vand.u32 %v859, 4294901760
        %1305 = vmatmul.f32.gmra.mxu0 %v1304
        %v1306 = vpop.f32.mrf.mxu0
        %v1307 = vadd.f32 %v1050, %v1306
        %v1308 = vand.u32 %v862, 4294901760
        %1309 = vmatmul.f32.gmra.mxu0 %v1308
        %v1310 = vpop.f32.mrf.mxu0
        %v1311 = vadd.f32 %v1058, %v1310
        %v1312 = vand.u32 %v865, 4294901760
        %1313 = vmatmul.f32.gmra.mxu0 %v1312
        %v1314 = vpop.f32.mrf.mxu0
        %v1315 = vadd.f32 %v1066, %v1314
        %v1316 = vand.u32 %v868, 4294901760
        %1317 = vmatmul.f32.gmra.mxu0 %v1316
        %v1318 = vpop.f32.mrf.mxu0
        %v1319 = vadd.f32 %v1074, %v1318
        %v1320 = vand.u32 %v871, 4294901760
        %1321 = vmatmul.f32.gmra.mxu0 %v1320
        %v1322 = vpop.f32.mrf.mxu0
        %v1323 = vadd.f32 %v1082, %v1322
        %v1324 = vand.u32 %v874, 4294901760
        %1325 = vmatmul.f32.gmra.mxu0 %v1324
        %v1326 = vpop.f32.mrf.mxu0
        %v1327 = vadd.f32 %v1090, %v1326
        %v1328 = vand.u32 %v877, 4294901760
        %1329 = vmatmul.f32.gmra.mxu0 %v1328
        %v1330 = vpop.f32.mrf.mxu0
        %v1331 = vadd.f32 %v1098, %v1330
        %v1332 = vand.u32 %v880, 4294901760
        %1333 = vmatmul.f32.gmra.mxu0 %v1332
        %v1334 = vpop.f32.mrf.mxu0
        %v1335 = vadd.f32 %v1106, %v1334
        %v1336 = vand.u32 %v883, 4294901760
        %1337 = vmatmul.f32.gmra.mxu0 %v1336
        %v1338 = vpop.f32.mrf.mxu0
        %v1339 = vadd.f32 %v1114, %v1338
        %v1340 = vand.u32 %v886, 4294901760
        %1341 = vmatmul.f32.gmra.mxu0 %v1340
        %v1342 = vpop.f32.mrf.mxu0
        %v1343 = vadd.f32 %v1122, %v1342
        %v1344 = vand.u32 %v889, 4294901760
        %1345 = vmatmul.f32.gmra.mxu0 %v1344
        %v1346 = vpop.f32.mrf.mxu0
        %v1347 = vadd.f32 %v1130, %v1346
        %v1348 = vand.u32 %v892, 4294901760
        %1349 = vmatmul.f32.gmra.mxu0 %v1348
        %v1350 = vpop.f32.mrf.mxu0
        %v1351 = vadd.f32 %v1138, %v1350
        %v1352 = vand.u32 %v895, 4294901760
        %1353 = vmatmul.f32.gmra.mxu0 %v1352
        %v1354 = vpop.f32.mrf.mxu0
        %v1355 = vadd.f32 %v1146, %v1354
        %v1356 = vand.u32 %v898, 4294901760
        %1357 = vmatmul.f32.gmra.mxu0 %v1356
        %v1358 = vpop.f32.mrf.mxu0
        %v1359 = vadd.f32 %v1154, %v1358
        %v1360 = vand.u32 %v901, 4294901760
        %1361 = vmatmul.f32.gmra.mxu0 %v1360
        %v1362 = vpop.f32.mrf.mxu0
        %v1363 = vadd.f32 %v1162, %v1362
        %v1364 = vand.u32 %v904, 4294901760
        %1365 = vmatmul.f32.gmra.mxu0 %v1364
        %v1366 = vpop.f32.mrf.mxu0
        %v1367 = vadd.f32 %v1170, %v1366
        %v1368 = vand.u32 %v907, 4294901760
        %1369 = vmatmul.f32.gmra.mxu0 %v1368
        %v1370 = vpop.f32.mrf.mxu0
        %v1371 = vadd.f32 %v1178, %v1370
        %v1372 = vand.u32 %v910, 4294901760
        %1373 = vmatmul.f32.gmra.mxu0 %v1372
        %v1374 = vpop.f32.mrf.mxu0
        %v1375 = vadd.f32 %v1186, %v1374
        %v1376 = vand.u32 %v913, 4294901760
        %1377 = vmatmul.f32.gmra.mxu0 %v1376
        %v1378 = vpop.f32.mrf.mxu0
        %v1379 = vadd.f32 %v1194, %v1378
        %1380 = vdwg.mxu0
        %1381 = vmatpush.msra.mxu0 0.0
        %1382 = vmatpush.msra.mxu0 0.0
        %1383 = vmatpush.msra.mxu0 0.0
        %1384 = vmatpush.msra.mxu0 0.0
        %1385 = vmatpush.msra.mxu0 0.0
        %1386 = vmatpush.msra.mxu0 0.0
        %1387 = vmatpush.msra.mxu0 0.0
        %1388 = vmatpush.msra.mxu0 0.0
        %v1389 = vand.u32 %v817, 4294901760
        %v1390 = vsub.f32 %v817, %v1389
        %1391 = vmatpush.msra.mxu0 %v1390
        %v1392 = vand.u32 %v816, 4294901760
        %v1393 = vsub.f32 %v816, %v1392
        %1394 = vmatpush.msra.mxu0 %v1393
        %v1395 = vand.u32 %v815, 4294901760
        %v1396 = vsub.f32 %v815, %v1395
        %1397 = vmatpush.msra.mxu0 %v1396
        %v1398 = vand.u32 %v814, 4294901760
        %v1399 = vsub.f32 %v814, %v1398
        %1400 = vmatpush.msra.mxu0 %v1399
        %v1401 = vand.u32 %v813, 4294901760
        %v1402 = vsub.f32 %v813, %v1401
        %1403 = vmatpush.msra.mxu0 %v1402
        %v1404 = vand.u32 %v812, 4294901760
        %v1405 = vsub.f32 %v812, %v1404
        %1406 = vmatpush.msra.mxu0 %v1405
        %v1407 = vand.u32 %v811, 4294901760
        %v1408 = vsub.f32 %v811, %v1407
        %1409 = vmatpush.msra.mxu0 %v1408
        %v1410 = vand.u32 %v810, 4294901760
        %v1411 = vsub.f32 %v810, %v1410
        %1412 = vmatpush.msra.mxu0 %v1411
        %v1413 = vand.u32 %v820, 4294901760
        %v1414 = vsub.f32 %v820, %v1413
        %1415 = vmatmul.f32.gmra.mxu0 %v1414
        %v1416 = vpop.f32.mrf.mxu0
        %v1417 = vadd.f32 %v1255, %v1416
        %v1418 = vand.u32 %v823, 4294901760
        %v1419 = vsub.f32 %v823, %v1418
        %1420 = vmatmul.f32.gmra.mxu0 %v1419
        %v1421 = vpop.f32.mrf.mxu0
        %v1422 = vadd.f32 %v1259, %v1421
        %v1423 = vand.u32 %v826, 4294901760
        %v1424 = vsub.f32 %v826, %v1423
        %1425 = vmatmul.f32.gmra.mxu0 %v1424
        %v1426 = vpop.f32.mrf.mxu0
        %v1427 = vadd.f32 %v1263, %v1426
        %v1428 = vand.u32 %v829, 4294901760
        %v1429 = vsub.f32 %v829, %v1428
        %1430 = vmatmul.f32.gmra.mxu0 %v1429
        %v1431 = vpop.f32.mrf.mxu0
        %v1432 = vadd.f32 %v1267, %v1431
        %v1433 = vand.u32 %v832, 4294901760
        %v1434 = vsub.f32 %v832, %v1433
        %1435 = vmatmul.f32.gmra.mxu0 %v1434
        %v1436 = vpop.f32.mrf.mxu0
        %v1437 = vadd.f32 %v1271, %v1436
        %v1438 = vand.u32 %v835, 4294901760
        %v1439 = vsub.f32 %v835, %v1438
        %1440 = vmatmul.f32.gmra.mxu0 %v1439
        %v1441 = vpop.f32.mrf.mxu0
        %v1442 = vadd.f32 %v1275, %v1441
        %v1443 = vand.u32 %v838, 4294901760
        %v1444 = vsub.f32 %v838, %v1443
        %1445 = vmatmul.f32.gmra.mxu0 %v1444
        %v1446 = vpop.f32.mrf.mxu0
        %v1447 = vadd.f32 %v1279, %v1446
        %v1448 = vand.u32 %v841, 4294901760
        %v1449 = vsub.f32 %v841, %v1448
        %1450 = vmatmul.f32.gmra.mxu0 %v1449
        %v1451 = vpop.f32.mrf.mxu0
        %v1452 = vadd.f32 %v1283, %v1451
        %v1453 = vand.u32 %v844, 4294901760
        %v1454 = vsub.f32 %v844, %v1453
        %1455 = vmatmul.f32.gmra.mxu0 %v1454
        %v1456 = vpop.f32.mrf.mxu0
        %v1457 = vadd.f32 %v1287, %v1456
        %v1458 = vand.u32 %v847, 4294901760
        %v1459 = vsub.f32 %v847, %v1458
        %1460 = vmatmul.f32.gmra.mxu0 %v1459
        %v1461 = vpop.f32.mrf.mxu0
        %v1462 = vadd.f32 %v1291, %v1461
        %v1463 = vand.u32 %v850, 4294901760
        %v1464 = vsub.f32 %v850, %v1463
        %1465 = vmatmul.f32.gmra.mxu0 %v1464
        %v1466 = vpop.f32.mrf.mxu0
        %v1467 = vadd.f32 %v1295, %v1466
        %v1468 = vand.u32 %v853, 4294901760
        %v1469 = vsub.f32 %v853, %v1468
        %1470 = vmatmul.f32.gmra.mxu0 %v1469
        %v1471 = vpop.f32.mrf.mxu0
        %v1472 = vadd.f32 %v1299, %v1471
        %v1473 = vand.u32 %v856, 4294901760
        %v1474 = vsub.f32 %v856, %v1473
        %1475 = vmatmul.f32.gmra.mxu0 %v1474
        %v1476 = vpop.f32.mrf.mxu0
        %v1477 = vadd.f32 %v1303, %v1476
        %v1478 = vand.u32 %v859, 4294901760
        %v1479 = vsub.f32 %v859, %v1478
        %1480 = vmatmul.f32.gmra.mxu0 %v1479
        %v1481 = vpop.f32.mrf.mxu0
        %v1482 = vadd.f32 %v1307, %v1481
        %v1483 = vand.u32 %v862, 4294901760
        %v1484 = vsub.f32 %v862, %v1483
        %1485 = vmatmul.f32.gmra.mxu0 %v1484
        %v1486 = vpop.f32.mrf.mxu0
        %v1487 = vadd.f32 %v1311, %v1486
        %v1488 = vand.u32 %v865, 4294901760
        %v1489 = vsub.f32 %v865, %v1488
        %1490 = vmatmul.f32.gmra.mxu0 %v1489
        %v1491 = vpop.f32.mrf.mxu0
        %v1492 = vadd.f32 %v1315, %v1491
        %v1493 = vand.u32 %v868, 4294901760
        %v1494 = vsub.f32 %v868, %v1493
        %1495 = vmatmul.f32.gmra.mxu0 %v1494
        %v1496 = vpop.f32.mrf.mxu0
        %v1497 = vadd.f32 %v1319, %v1496
        %v1498 = vand.u32 %v871, 4294901760
        %v1499 = vsub.f32 %v871, %v1498
        %1500 = vmatmul.f32.gmra.mxu0 %v1499
        %v1501 = vpop.f32.mrf.mxu0
        %v1502 = vadd.f32 %v1323, %v1501
        %v1503 = vand.u32 %v874, 4294901760
        %v1504 = vsub.f32 %v874, %v1503
        %1505 = vmatmul.f32.gmra.mxu0 %v1504
        %v1506 = vpop.f32.mrf.mxu0
        %v1507 = vadd.f32 %v1327, %v1506
        %v1508 = vand.u32 %v877, 4294901760
        %v1509 = vsub.f32 %v877, %v1508
        %1510 = vmatmul.f32.gmra.mxu0 %v1509
        %v1511 = vpop.f32.mrf.mxu0
        %v1512 = vadd.f32 %v1331, %v1511
        %v1513 = vand.u32 %v880, 4294901760
        %v1514 = vsub.f32 %v880, %v1513
        %1515 = vmatmul.f32.gmra.mxu0 %v1514
        %v1516 = vpop.f32.mrf.mxu0
        %v1517 = vadd.f32 %v1335, %v1516
        %v1518 = vand.u32 %v883, 4294901760
        %v1519 = vsub.f32 %v883, %v1518
        %1520 = vmatmul.f32.gmra.mxu0 %v1519
        %v1521 = vpop.f32.mrf.mxu0
        %v1522 = vadd.f32 %v1339, %v1521
        %v1523 = vand.u32 %v886, 4294901760
        %v1524 = vsub.f32 %v886, %v1523
        %1525 = vmatmul.f32.gmra.mxu0 %v1524
        %v1526 = vpop.f32.mrf.mxu0
        %v1527 = vadd.f32 %v1343, %v1526
        %v1528 = vand.u32 %v889, 4294901760
        %v1529 = vsub.f32 %v889, %v1528
        %1530 = vmatmul.f32.gmra.mxu0 %v1529
        %v1531 = vpop.f32.mrf.mxu0
        %v1532 = vadd.f32 %v1347, %v1531
        %v1533 = vand.u32 %v892, 4294901760
        %v1534 = vsub.f32 %v892, %v1533
        %1535 = vmatmul.f32.gmra.mxu0 %v1534
        %v1536 = vpop.f32.mrf.mxu0
        %v1537 = vadd.f32 %v1351, %v1536
        %v1538 = vand.u32 %v895, 4294901760
        %v1539 = vsub.f32 %v895, %v1538
        %1540 = vmatmul.f32.gmra.mxu0 %v1539
        %v1541 = vpop.f32.mrf.mxu0
        %v1542 = vadd.f32 %v1355, %v1541
        %v1543 = vand.u32 %v898, 4294901760
        %v1544 = vsub.f32 %v898, %v1543
        %1545 = vmatmul.f32.gmra.mxu0 %v1544
        %v1546 = vpop.f32.mrf.mxu0
        %v1547 = vadd.f32 %v1359, %v1546
        %v1548 = vand.u32 %v901, 4294901760
        %v1549 = vsub.f32 %v901, %v1548
        %1550 = vmatmul.f32.gmra.mxu0 %v1549
        %v1551 = vpop.f32.mrf.mxu0
        %v1552 = vadd.f32 %v1363, %v1551
        %v1553 = vand.u32 %v904, 4294901760
        %v1554 = vsub.f32 %v904, %v1553
        %1555 = vmatmul.f32.gmra.mxu0 %v1554
        %v1556 = vpop.f32.mrf.mxu0
        %v1557 = vadd.f32 %v1367, %v1556
        %v1558 = vand.u32 %v907, 4294901760
        %v1559 = vsub.f32 %v907, %v1558
        %1560 = vmatmul.f32.gmra.mxu0 %v1559
        %v1561 = vpop.f32.mrf.mxu0
        %v1562 = vadd.f32 %v1371, %v1561
        %v1563 = vand.u32 %v910, 4294901760
        %v1564 = vsub.f32 %v910, %v1563
        %1565 = vmatmul.f32.gmra.mxu0 %v1564
        %v1566 = vpop.f32.mrf.mxu0
        %v1567 = vadd.f32 %v1375, %v1566
        %v1568 = vand.u32 %v913, 4294901760
        %v1569 = vsub.f32 %v913, %v1568
        %1570 = vmatmul.f32.gmra.mxu0 %v1569
        %v1571 = vpop.f32.mrf.mxu0
        %v1572 = vadd.f32 %v1379, %v1571
        %1573 = vdwg.mxu0
        %1574 = vmatpush.msra.mxu0 0.0
        %1575 = vmatpush.msra.mxu0 0.0
        %1576 = vmatpush.msra.mxu0 0.0
        %1577 = vmatpush.msra.mxu0 0.0
        %1578 = vmatpush.msra.mxu0 0.0
        %1579 = vmatpush.msra.mxu0 0.0
        %1580 = vmatpush.msra.mxu0 0.0
        %1581 = vmatpush.msra.mxu0 0.0
        %v1582 = vand.u32 %v817, 4294901760
        %1583 = vmatpush.msra.mxu0 %v1582
        %v1584 = vand.u32 %v816, 4294901760
        %1585 = vmatpush.msra.mxu0 %v1584
        %v1586 = vand.u32 %v815, 4294901760
        %1587 = vmatpush.msra.mxu0 %v1586
        %v1588 = vand.u32 %v814, 4294901760
        %1589 = vmatpush.msra.mxu0 %v1588
        %v1590 = vand.u32 %v813, 4294901760
        %1591 = vmatpush.msra.mxu0 %v1590
        %v1592 = vand.u32 %v812, 4294901760
        %1593 = vmatpush.msra.mxu0 %v1592
        %v1594 = vand.u32 %v811, 4294901760
        %1595 = vmatpush.msra.mxu0 %v1594
        %v1596 = vand.u32 %v810, 4294901760
        %1597 = vmatpush.msra.mxu0 %v1596
        %v1598 = vand.u32 %v820, 4294901760
        %v1599 = vsub.f32 %v820, %v1598
        %v1600 = vand.u32 %v1599, 4294901760
        %1601 = vmatmul.f32.gmra.mxu0 %v1600
        %v1602 = vpop.f32.mrf.mxu0
        %v1603 = vadd.f32 %v1417, %v1602
        %v1604 = vand.u32 %v823, 4294901760
        %v1605 = vsub.f32 %v823, %v1604
        %v1606 = vand.u32 %v1605, 4294901760
        %1607 = vmatmul.f32.gmra.mxu0 %v1606
        %v1608 = vpop.f32.mrf.mxu0
        %v1609 = vadd.f32 %v1422, %v1608
        %v1610 = vand.u32 %v826, 4294901760
        %v1611 = vsub.f32 %v826, %v1610
        %v1612 = vand.u32 %v1611, 4294901760
        %1613 = vmatmul.f32.gmra.mxu0 %v1612
        %v1614 = vpop.f32.mrf.mxu0
        %v1615 = vadd.f32 %v1427, %v1614
        %v1616 = vand.u32 %v829, 4294901760
        %v1617 = vsub.f32 %v829, %v1616
        %v1618 = vand.u32 %v1617, 4294901760
        %1619 = vmatmul.f32.gmra.mxu0 %v1618
        %v1620 = vpop.f32.mrf.mxu0
        %v1621 = vadd.f32 %v1432, %v1620
        %v1622 = vand.u32 %v832, 4294901760
        %v1623 = vsub.f32 %v832, %v1622
        %v1624 = vand.u32 %v1623, 4294901760
        %1625 = vmatmul.f32.gmra.mxu0 %v1624
        %v1626 = vpop.f32.mrf.mxu0
        %v1627 = vadd.f32 %v1437, %v1626
        %v1628 = vand.u32 %v835, 4294901760
        %v1629 = vsub.f32 %v835, %v1628
        %v1630 = vand.u32 %v1629, 4294901760
        %1631 = vmatmul.f32.gmra.mxu0 %v1630
        %v1632 = vpop.f32.mrf.mxu0
        %v1633 = vadd.f32 %v1442, %v1632
        %v1634 = vand.u32 %v838, 4294901760
        %v1635 = vsub.f32 %v838, %v1634
        %v1636 = vand.u32 %v1635, 4294901760
        %1637 = vmatmul.f32.gmra.mxu0 %v1636
        %v1638 = vpop.f32.mrf.mxu0
        %v1639 = vadd.f32 %v1447, %v1638
        %v1640 = vand.u32 %v841, 4294901760
        %v1641 = vsub.f32 %v841, %v1640
        %v1642 = vand.u32 %v1641, 4294901760
        %1643 = vmatmul.f32.gmra.mxu0 %v1642
        %v1644 = vpop.f32.mrf.mxu0
        %v1645 = vadd.f32 %v1452, %v1644
        %v1646 = vand.u32 %v844, 4294901760
        %v1647 = vsub.f32 %v844, %v1646
        %v1648 = vand.u32 %v1647, 4294901760
        %1649 = vmatmul.f32.gmra.mxu0 %v1648
        %v1650 = vpop.f32.mrf.mxu0
        %v1651 = vadd.f32 %v1457, %v1650
        %v1652 = vand.u32 %v847, 4294901760
        %v1653 = vsub.f32 %v847, %v1652
        %v1654 = vand.u32 %v1653, 4294901760
        %1655 = vmatmul.f32.gmra.mxu0 %v1654
        %v1656 = vpop.f32.mrf.mxu0
        %v1657 = vadd.f32 %v1462, %v1656
        %v1658 = vand.u32 %v850, 4294901760
        %v1659 = vsub.f32 %v850, %v1658
        %v1660 = vand.u32 %v1659, 4294901760
        %1661 = vmatmul.f32.gmra.mxu0 %v1660
        %v1662 = vpop.f32.mrf.mxu0
        %v1663 = vadd.f32 %v1467, %v1662
        %v1664 = vand.u32 %v853, 4294901760
        %v1665 = vsub.f32 %v853, %v1664
        %v1666 = vand.u32 %v1665, 4294901760
        %1667 = vmatmul.f32.gmra.mxu0 %v1666
        %v1668 = vpop.f32.mrf.mxu0
        %v1669 = vadd.f32 %v1472, %v1668
        %v1670 = vand.u32 %v856, 4294901760
        %v1671 = vsub.f32 %v856, %v1670
        %v1672 = vand.u32 %v1671, 4294901760
        %1673 = vmatmul.f32.gmra.mxu0 %v1672
        %v1674 = vpop.f32.mrf.mxu0
        %v1675 = vadd.f32 %v1477, %v1674
        %v1676 = vand.u32 %v859, 4294901760
        %v1677 = vsub.f32 %v859, %v1676
        %v1678 = vand.u32 %v1677, 4294901760
        %1679 = vmatmul.f32.gmra.mxu0 %v1678
        %v1680 = vpop.f32.mrf.mxu0
        %v1681 = vadd.f32 %v1482, %v1680
        %v1682 = vand.u32 %v862, 4294901760
        %v1683 = vsub.f32 %v862, %v1682
        %v1684 = vand.u32 %v1683, 4294901760
        %1685 = vmatmul.f32.gmra.mxu0 %v1684
        %v1686 = vpop.f32.mrf.mxu0
        %v1687 = vadd.f32 %v1487, %v1686
        %v1688 = vand.u32 %v865, 4294901760
        %v1689 = vsub.f32 %v865, %v1688
        %v1690 = vand.u32 %v1689, 4294901760
        %1691 = vmatmul.f32.gmra.mxu0 %v1690
        %v1692 = vpop.f32.mrf.mxu0
        %v1693 = vadd.f32 %v1492, %v1692
        %v1694 = vand.u32 %v868, 4294901760
        %v1695 = vsub.f32 %v868, %v1694
        %v1696 = vand.u32 %v1695, 4294901760
        %1697 = vmatmul.f32.gmra.mxu0 %v1696
        %v1698 = vpop.f32.mrf.mxu0
        %v1699 = vadd.f32 %v1497, %v1698
        %v1700 = vand.u32 %v871, 4294901760
        %v1701 = vsub.f32 %v871, %v1700
        %v1702 = vand.u32 %v1701, 4294901760
        %1703 = vmatmul.f32.gmra.mxu0 %v1702
        %v1704 = vpop.f32.mrf.mxu0
        %v1705 = vadd.f32 %v1502, %v1704
        %v1706 = vand.u32 %v874, 4294901760
        %v1707 = vsub.f32 %v874, %v1706
        %v1708 = vand.u32 %v1707, 4294901760
        %1709 = vmatmul.f32.gmra.mxu0 %v1708
        %v1710 = vpop.f32.mrf.mxu0
        %v1711 = vadd.f32 %v1507, %v1710
        %v1712 = vand.u32 %v877, 4294901760
        %v1713 = vsub.f32 %v877, %v1712
        %v1714 = vand.u32 %v1713, 4294901760
        %1715 = vmatmul.f32.gmra.mxu0 %v1714
        %v1716 = vpop.f32.mrf.mxu0
        %v1717 = vadd.f32 %v1512, %v1716
        %v1718 = vand.u32 %v880, 4294901760
        %v1719 = vsub.f32 %v880, %v1718
        %v1720 = vand.u32 %v1719, 4294901760
        %1721 = vmatmul.f32.gmra.mxu0 %v1720
        %v1722 = vpop.f32.mrf.mxu0
        %v1723 = vadd.f32 %v1517, %v1722
        %v1724 = vand.u32 %v883, 4294901760
        %v1725 = vsub.f32 %v883, %v1724
        %v1726 = vand.u32 %v1725, 4294901760
        %1727 = vmatmul.f32.gmra.mxu0 %v1726
        %v1728 = vpop.f32.mrf.mxu0
        %v1729 = vadd.f32 %v1522, %v1728
        %v1730 = vand.u32 %v886, 4294901760
        %v1731 = vsub.f32 %v886, %v1730
        %v1732 = vand.u32 %v1731, 4294901760
        %1733 = vmatmul.f32.gmra.mxu0 %v1732
        %v1734 = vpop.f32.mrf.mxu0
        %v1735 = vadd.f32 %v1527, %v1734
        %v1736 = vand.u32 %v889, 4294901760
        %v1737 = vsub.f32 %v889, %v1736
        %v1738 = vand.u32 %v1737, 4294901760
        %1739 = vmatmul.f32.gmra.mxu0 %v1738
        %v1740 = vpop.f32.mrf.mxu0
        %v1741 = vadd.f32 %v1532, %v1740
        %v1742 = vand.u32 %v892, 4294901760
        %v1743 = vsub.f32 %v892, %v1742
        %v1744 = vand.u32 %v1743, 4294901760
        %1745 = vmatmul.f32.gmra.mxu0 %v1744
        %v1746 = vpop.f32.mrf.mxu0
        %v1747 = vadd.f32 %v1537, %v1746
        %v1748 = vand.u32 %v895, 4294901760
        %v1749 = vsub.f32 %v895, %v1748
        %v1750 = vand.u32 %v1749, 4294901760
        %1751 = vmatmul.f32.gmra.mxu0 %v1750
        %v1752 = vpop.f32.mrf.mxu0
        %v1753 = vadd.f32 %v1542, %v1752
        %v1754 = vand.u32 %v898, 4294901760
        %v1755 = vsub.f32 %v898, %v1754
        %v1756 = vand.u32 %v1755, 4294901760
        %1757 = vmatmul.f32.gmra.mxu0 %v1756
        %v1758 = vpop.f32.mrf.mxu0
        %v1759 = vadd.f32 %v1547, %v1758
        %v1760 = vand.u32 %v901, 4294901760
        %v1761 = vsub.f32 %v901, %v1760
        %v1762 = vand.u32 %v1761, 4294901760
        %1763 = vmatmul.f32.gmra.mxu0 %v1762
        %v1764 = vpop.f32.mrf.mxu0
        %v1765 = vadd.f32 %v1552, %v1764
        %v1766 = vand.u32 %v904, 4294901760
        %v1767 = vsub.f32 %v904, %v1766
        %v1768 = vand.u32 %v1767, 4294901760
        %1769 = vmatmul.f32.gmra.mxu0 %v1768
        %v1770 = vpop.f32.mrf.mxu0
        %v1771 = vadd.f32 %v1557, %v1770
        %v1772 = vand.u32 %v907, 4294901760
        %v1773 = vsub.f32 %v907, %v1772
        %v1774 = vand.u32 %v1773, 4294901760
        %1775 = vmatmul.f32.gmra.mxu0 %v1774
        %v1776 = vpop.f32.mrf.mxu0
        %v1777 = vadd.f32 %v1562, %v1776
        %v1778 = vand.u32 %v910, 4294901760
        %v1779 = vsub.f32 %v910, %v1778
        %v1780 = vand.u32 %v1779, 4294901760
        %1781 = vmatmul.f32.gmra.mxu0 %v1780
        %v1782 = vpop.f32.mrf.mxu0
        %v1783 = vadd.f32 %v1567, %v1782
        %v1784 = vand.u32 %v913, 4294901760
        %v1785 = vsub.f32 %v913, %v1784
        %v1786 = vand.u32 %v1785, 4294901760
        %1787 = vmatmul.f32.gmra.mxu0 %v1786
        %v1788 = vpop.f32.mrf.mxu0
        %v1789 = vadd.f32 %v1572, %v1788
        %1790 = vdwg.mxu0
        %1791 = vmatpush.msra.mxu0 0.0
        %1792 = vmatpush.msra.mxu0 0.0
        %1793 = vmatpush.msra.mxu0 0.0
        %1794 = vmatpush.msra.mxu0 0.0
        %1795 = vmatpush.msra.mxu0 0.0
        %1796 = vmatpush.msra.mxu0 0.0
        %1797 = vmatpush.msra.mxu0 0.0
        %1798 = vmatpush.msra.mxu0 0.0
        %v1799 = vand.u32 %v817, 4294901760
        %v1800 = vsub.f32 %v817, %v1799
        %v1801 = vand.u32 %v1800, 4294901760
        %1802 = vmatpush.msra.mxu0 %v1801
        %v1803 = vand.u32 %v816, 4294901760
        %v1804 = vsub.f32 %v816, %v1803
        %v1805 = vand.u32 %v1804, 4294901760
        %1806 = vmatpush.msra.mxu0 %v1805
        %v1807 = vand.u32 %v815, 4294901760
        %v1808 = vsub.f32 %v815, %v1807
        %v1809 = vand.u32 %v1808, 4294901760
        %1810 = vmatpush.msra.mxu0 %v1809
        %v1811 = vand.u32 %v814, 4294901760
        %v1812 = vsub.f32 %v814, %v1811
        %v1813 = vand.u32 %v1812, 4294901760
        %1814 = vmatpush.msra.mxu0 %v1813
        %v1815 = vand.u32 %v813, 4294901760
        %v1816 = vsub.f32 %v813, %v1815
        %v1817 = vand.u32 %v1816, 4294901760
        %1818 = vmatpush.msra.mxu0 %v1817
        %v1819 = vand.u32 %v812, 4294901760
        %v1820 = vsub.f32 %v812, %v1819
        %v1821 = vand.u32 %v1820, 4294901760
        %1822 = vmatpush.msra.mxu0 %v1821
        %v1823 = vand.u32 %v811, 4294901760
        %v1824 = vsub.f32 %v811, %v1823
        %v1825 = vand.u32 %v1824, 4294901760
        %1826 = vmatpush.msra.mxu0 %v1825
        %v1827 = vand.u32 %v810, 4294901760
        %v1828 = vsub.f32 %v810, %v1827
        %v1829 = vand.u32 %v1828, 4294901760
        %1830 = vmatpush.msra.mxu0 %v1829
        %v1831 = vand.u32 %v820, 4294901760
        %1832 = vmatmul.f32.gmra.mxu0 %v1831
        %v1833 = vpop.f32.mrf.mxu0
        %v1834 = vadd.f32 %v1603, %v1833
        %v1835 = vand.u32 %v823, 4294901760
        %1836 = vmatmul.f32.gmra.mxu0 %v1835
        %v1837 = vpop.f32.mrf.mxu0
        %v1838 = vadd.f32 %v1609, %v1837
        %v1839 = vand.u32 %v826, 4294901760
        %1840 = vmatmul.f32.gmra.mxu0 %v1839
        %v1841 = vpop.f32.mrf.mxu0
        %v1842 = vadd.f32 %v1615, %v1841
        %v1843 = vand.u32 %v829, 4294901760
        %1844 = vmatmul.f32.gmra.mxu0 %v1843
        %v1845 = vpop.f32.mrf.mxu0
        %v1846 = vadd.f32 %v1621, %v1845
        %v1847 = vand.u32 %v832, 4294901760
        %1848 = vmatmul.f32.gmra.mxu0 %v1847
        %v1849 = vpop.f32.mrf.mxu0
        %v1850 = vadd.f32 %v1627, %v1849
        %v1851 = vand.u32 %v835, 4294901760
        %1852 = vmatmul.f32.gmra.mxu0 %v1851
        %v1853 = vpop.f32.mrf.mxu0
        %v1854 = vadd.f32 %v1633, %v1853
        %v1855 = vand.u32 %v838, 4294901760
        %1856 = vmatmul.f32.gmra.mxu0 %v1855
        %v1857 = vpop.f32.mrf.mxu0
        %v1858 = vadd.f32 %v1639, %v1857
        %v1859 = vand.u32 %v841, 4294901760
        %1860 = vmatmul.f32.gmra.mxu0 %v1859
        %v1861 = vpop.f32.mrf.mxu0
        %v1862 = vadd.f32 %v1645, %v1861
        %v1863 = vand.u32 %v844, 4294901760
        %1864 = vmatmul.f32.gmra.mxu0 %v1863
        %v1865 = vpop.f32.mrf.mxu0
        %v1866 = vadd.f32 %v1651, %v1865
        %v1867 = vand.u32 %v847, 4294901760
        %1868 = vmatmul.f32.gmra.mxu0 %v1867
        %v1869 = vpop.f32.mrf.mxu0
        %v1870 = vadd.f32 %v1657, %v1869
        %v1871 = vand.u32 %v850, 4294901760
        %1872 = vmatmul.f32.gmra.mxu0 %v1871
        %v1873 = vpop.f32.mrf.mxu0
        %v1874 = vadd.f32 %v1663, %v1873
        %v1875 = vand.u32 %v853, 4294901760
        %1876 = vmatmul.f32.gmra.mxu0 %v1875
        %v1877 = vpop.f32.mrf.mxu0
        %v1878 = vadd.f32 %v1669, %v1877
        %v1879 = vand.u32 %v856, 4294901760
        %1880 = vmatmul.f32.gmra.mxu0 %v1879
        %v1881 = vpop.f32.mrf.mxu0
        %v1882 = vadd.f32 %v1675, %v1881
        %v1883 = vand.u32 %v859, 4294901760
        %1884 = vmatmul.f32.gmra.mxu0 %v1883
        %v1885 = vpop.f32.mrf.mxu0
        %v1886 = vadd.f32 %v1681, %v1885
        %v1887 = vand.u32 %v862, 4294901760
        %1888 = vmatmul.f32.gmra.mxu0 %v1887
        %v1889 = vpop.f32.mrf.mxu0
        %v1890 = vadd.f32 %v1687, %v1889
        %v1891 = vand.u32 %v865, 4294901760
        %1892 = vmatmul.f32.gmra.mxu0 %v1891
        %v1893 = vpop.f32.mrf.mxu0
        %v1894 = vadd.f32 %v1693, %v1893
        %v1895 = vand.u32 %v868, 4294901760
        %1896 = vmatmul.f32.gmra.mxu0 %v1895
        %v1897 = vpop.f32.mrf.mxu0
        %v1898 = vadd.f32 %v1699, %v1897
        %v1899 = vand.u32 %v871, 4294901760
        %1900 = vmatmul.f32.gmra.mxu0 %v1899
        %v1901 = vpop.f32.mrf.mxu0
        %v1902 = vadd.f32 %v1705, %v1901
        %v1903 = vand.u32 %v874, 4294901760
        %1904 = vmatmul.f32.gmra.mxu0 %v1903
        %v1905 = vpop.f32.mrf.mxu0
        %v1906 = vadd.f32 %v1711, %v1905
        %v1907 = vand.u32 %v877, 4294901760
        %1908 = vmatmul.f32.gmra.mxu0 %v1907
        %v1909 = vpop.f32.mrf.mxu0
        %v1910 = vadd.f32 %v1717, %v1909
        %v1911 = vand.u32 %v880, 4294901760
        %1912 = vmatmul.f32.gmra.mxu0 %v1911
        %v1913 = vpop.f32.mrf.mxu0
        %v1914 = vadd.f32 %v1723, %v1913
        %v1915 = vand.u32 %v883, 4294901760
        %1916 = vmatmul.f32.gmra.mxu0 %v1915
        %v1917 = vpop.f32.mrf.mxu0
        %v1918 = vadd.f32 %v1729, %v1917
        %v1919 = vand.u32 %v886, 4294901760
        %1920 = vmatmul.f32.gmra.mxu0 %v1919
        %v1921 = vpop.f32.mrf.mxu0
        %v1922 = vadd.f32 %v1735, %v1921
        %v1923 = vand.u32 %v889, 4294901760
        %1924 = vmatmul.f32.gmra.mxu0 %v1923
        %v1925 = vpop.f32.mrf.mxu0
        %v1926 = vadd.f32 %v1741, %v1925
        %v1927 = vand.u32 %v892, 4294901760
        %1928 = vmatmul.f32.gmra.mxu0 %v1927
        %v1929 = vpop.f32.mrf.mxu0
        %v1930 = vadd.f32 %v1747, %v1929
        %v1931 = vand.u32 %v895, 4294901760
        %1932 = vmatmul.f32.gmra.mxu0 %v1931
        %v1933 = vpop.f32.mrf.mxu0
        %v1934 = vadd.f32 %v1753, %v1933
        %v1935 = vand.u32 %v898, 4294901760
        %1936 = vmatmul.f32.gmra.mxu0 %v1935
        %v1937 = vpop.f32.mrf.mxu0
        %v1938 = vadd.f32 %v1759, %v1937
        %v1939 = vand.u32 %v901, 4294901760
        %1940 = vmatmul.f32.gmra.mxu0 %v1939
        %v1941 = vpop.f32.mrf.mxu0
        %v1942 = vadd.f32 %v1765, %v1941
        %v1943 = vand.u32 %v904, 4294901760
        %1944 = vmatmul.f32.gmra.mxu0 %v1943
        %v1945 = vpop.f32.mrf.mxu0
        %v1946 = vadd.f32 %v1771, %v1945
        %v1947 = vand.u32 %v907, 4294901760
        %1948 = vmatmul.f32.gmra.mxu0 %v1947
        %v1949 = vpop.f32.mrf.mxu0
        %v1950 = vadd.f32 %v1777, %v1949
        %v1951 = vand.u32 %v910, 4294901760
        %1952 = vmatmul.f32.gmra.mxu0 %v1951
        %v1953 = vpop.f32.mrf.mxu0
        %v1954 = vadd.f32 %v1783, %v1953
        %v1955 = vand.u32 %v913, 4294901760
        %1956 = vmatmul.f32.gmra.mxu0 %v1955
        %v1957 = vpop.f32.mrf.mxu0
        %v1958 = vadd.f32 %v1789, %v1957
        %1959 = vdwg.mxu0
        %1960 = vmatpush.msra.mxu0 0.0
        %1961 = vmatpush.msra.mxu0 0.0
        %1962 = vmatpush.msra.mxu0 0.0
        %1963 = vmatpush.msra.mxu0 0.0
        %1964 = vmatpush.msra.mxu0 0.0
        %1965 = vmatpush.msra.mxu0 0.0
        %1966 = vmatpush.msra.mxu0 0.0
        %1967 = vmatpush.msra.mxu0 0.0
        %v1968 = vand.u32 %v817, 4294901760
        %1969 = vmatpush.msra.mxu0 %v1968
        %v1970 = vand.u32 %v816, 4294901760
        %1971 = vmatpush.msra.mxu0 %v1970
        %v1972 = vand.u32 %v815, 4294901760
        %1973 = vmatpush.msra.mxu0 %v1972
        %v1974 = vand.u32 %v814, 4294901760
        %1975 = vmatpush.msra.mxu0 %v1974
        %v1976 = vand.u32 %v813, 4294901760
        %1977 = vmatpush.msra.mxu0 %v1976
        %v1978 = vand.u32 %v812, 4294901760
        %1979 = vmatpush.msra.mxu0 %v1978
        %v1980 = vand.u32 %v811, 4294901760
        %1981 = vmatpush.msra.mxu0 %v1980
        %v1982 = vand.u32 %v810, 4294901760
        %1983 = vmatpush.msra.mxu0 %v1982
        %v1984 = vand.u32 %v820, 4294901760
        %1985 = vmatmul.f32.gmra.mxu0 %v1984
        %v1986 = vpop.f32.mrf.mxu0
        %v1987 = vadd.f32 %v1834, %v1986
        %v1988 = vand.u32 %v823, 4294901760
        %1989 = vmatmul.f32.gmra.mxu0 %v1988
        %v1990 = vpop.f32.mrf.mxu0
        %v1991 = vadd.f32 %v1838, %v1990
        %v1992 = vand.u32 %v826, 4294901760
        %1993 = vmatmul.f32.gmra.mxu0 %v1992
        %v1994 = vpop.f32.mrf.mxu0
        %v1995 = vadd.f32 %v1842, %v1994
        %v1996 = vand.u32 %v829, 4294901760
        %1997 = vmatmul.f32.gmra.mxu0 %v1996
        %v1998 = vpop.f32.mrf.mxu0
        %v1999 = vadd.f32 %v1846, %v1998
        %v2000 = vand.u32 %v832, 4294901760
        %2001 = vmatmul.f32.gmra.mxu0 %v2000
        %v2002 = vpop.f32.mrf.mxu0
        %v2003 = vadd.f32 %v1850, %v2002
        %v2004 = vand.u32 %v835, 4294901760
        %2005 = vmatmul.f32.gmra.mxu0 %v2004
        %v2006 = vpop.f32.mrf.mxu0
        %v2007 = vadd.f32 %v1854, %v2006
        %v2008 = vand.u32 %v838, 4294901760
        %2009 = vmatmul.f32.gmra.mxu0 %v2008
        %v2010 = vpop.f32.mrf.mxu0
        %v2011 = vadd.f32 %v1858, %v2010
        %v2012 = vand.u32 %v841, 4294901760
        %2013 = vmatmul.f32.gmra.mxu0 %v2012
        %v2014 = vpop.f32.mrf.mxu0
        %v2015 = vadd.f32 %v1862, %v2014
        %v2016 = vand.u32 %v844, 4294901760
        %2017 = vmatmul.f32.gmra.mxu0 %v2016
        %v2018 = vpop.f32.mrf.mxu0
        %v2019 = vadd.f32 %v1866, %v2018
        %v2020 = vand.u32 %v847, 4294901760
        %2021 = vmatmul.f32.gmra.mxu0 %v2020
        %v2022 = vpop.f32.mrf.mxu0
        %v2023 = vadd.f32 %v1870, %v2022
        %v2024 = vand.u32 %v850, 4294901760
        %2025 = vmatmul.f32.gmra.mxu0 %v2024
        %v2026 = vpop.f32.mrf.mxu0
        %v2027 = vadd.f32 %v1874, %v2026
        %v2028 = vand.u32 %v853, 4294901760
        %2029 = vmatmul.f32.gmra.mxu0 %v2028
        %v2030 = vpop.f32.mrf.mxu0
        %v2031 = vadd.f32 %v1878, %v2030
        %v2032 = vand.u32 %v856, 4294901760
        %2033 = vmatmul.f32.gmra.mxu0 %v2032
        %v2034 = vpop.f32.mrf.mxu0
        %v2035 = vadd.f32 %v1882, %v2034
        %v2036 = vand.u32 %v859, 4294901760
        %2037 = vmatmul.f32.gmra.mxu0 %v2036
        %v2038 = vpop.f32.mrf.mxu0
        %v2039 = vadd.f32 %v1886, %v2038
        %v2040 = vand.u32 %v862, 4294901760
        %2041 = vmatmul.f32.gmra.mxu0 %v2040
        %v2042 = vpop.f32.mrf.mxu0
        %v2043 = vadd.f32 %v1890, %v2042
        %v2044 = vand.u32 %v865, 4294901760
        %2045 = vmatmul.f32.gmra.mxu0 %v2044
        %v2046 = vpop.f32.mrf.mxu0
        %v2047 = vadd.f32 %v1894, %v2046
        %v2048 = vand.u32 %v868, 4294901760
        %2049 = vmatmul.f32.gmra.mxu0 %v2048
        %v2050 = vpop.f32.mrf.mxu0
        %v2051 = vadd.f32 %v1898, %v2050
        %v2052 = vand.u32 %v871, 4294901760
        %2053 = vmatmul.f32.gmra.mxu0 %v2052
        %v2054 = vpop.f32.mrf.mxu0
        %v2055 = vadd.f32 %v1902, %v2054
        %v2056 = vand.u32 %v874, 4294901760
        %2057 = vmatmul.f32.gmra.mxu0 %v2056
        %v2058 = vpop.f32.mrf.mxu0
        %v2059 = vadd.f32 %v1906, %v2058
        %v2060 = vand.u32 %v877, 4294901760
        %2061 = vmatmul.f32.gmra.mxu0 %v2060
        %v2062 = vpop.f32.mrf.mxu0
        %v2063 = vadd.f32 %v1910, %v2062
        %v2064 = vand.u32 %v880, 4294901760
        %2065 = vmatmul.f32.gmra.mxu0 %v2064
        %v2066 = vpop.f32.mrf.mxu0
        %v2067 = vadd.f32 %v1914, %v2066
        %v2068 = vand.u32 %v883, 4294901760
        %2069 = vmatmul.f32.gmra.mxu0 %v2068
        %v2070 = vpop.f32.mrf.mxu0
        %v2071 = vadd.f32 %v1918, %v2070
        %v2072 = vand.u32 %v886, 4294901760
        %2073 = vmatmul.f32.gmra.mxu0 %v2072
        %v2074 = vpop.f32.mrf.mxu0
        %v2075 = vadd.f32 %v1922, %v2074
        %v2076 = vand.u32 %v889, 4294901760
        %2077 = vmatmul.f32.gmra.mxu0 %v2076
        %v2078 = vpop.f32.mrf.mxu0
        %v2079 = vadd.f32 %v1926, %v2078
        %v2080 = vand.u32 %v892, 4294901760
        %2081 = vmatmul.f32.gmra.mxu0 %v2080
        %v2082 = vpop.f32.mrf.mxu0
        %v2083 = vadd.f32 %v1930, %v2082
        %v2084 = vand.u32 %v895, 4294901760
        %2085 = vmatmul.f32.gmra.mxu0 %v2084
        %v2086 = vpop.f32.mrf.mxu0
        %v2087 = vadd.f32 %v1934, %v2086
        %v2088 = vand.u32 %v898, 4294901760
        %2089 = vmatmul.f32.gmra.mxu0 %v2088
        %v2090 = vpop.f32.mrf.mxu0
        %v2091 = vadd.f32 %v1938, %v2090
        %v2092 = vand.u32 %v901, 4294901760
        %2093 = vmatmul.f32.gmra.mxu0 %v2092
        %v2094 = vpop.f32.mrf.mxu0
        %v2095 = vadd.f32 %v1942, %v2094
        %v2096 = vand.u32 %v904, 4294901760
        %2097 = vmatmul.f32.gmra.mxu0 %v2096
        %v2098 = vpop.f32.mrf.mxu0
        %v2099 = vadd.f32 %v1946, %v2098
        %v2100 = vand.u32 %v907, 4294901760
        %2101 = vmatmul.f32.gmra.mxu0 %v2100
        %v2102 = vpop.f32.mrf.mxu0
        %v2103 = vadd.f32 %v1950, %v2102
        %v2104 = vand.u32 %v910, 4294901760
        %2105 = vmatmul.f32.gmra.mxu0 %v2104
        %v2106 = vpop.f32.mrf.mxu0
        %v2107 = vadd.f32 %v1954, %v2106
        %v2108 = vand.u32 %v913, 4294901760
        %2109 = vmatmul.f32.gmra.mxu0 %v2108
        %v2110 = vpop.f32.mrf.mxu0
        %v2111 = vadd.f32 %v1958, %v2110
        %2112 = vdwg.mxu0
        %2113 = vst.msk [vmem:[%s180] sm:$0xff] %vm818, %v1987
        %2114 = vst.msk [vmem:[%s180 + $0x8] sm:$0xff] %vm818, %v1991
        %2115 = vst.msk [vmem:[%s180 + $0x10] sm:$0xff] %vm818, %v1995
        %2116 = vst.msk [vmem:[%s180 + $0x18] sm:$0xff] %vm818, %v1999
        %2117 = vst.msk [vmem:[%s180 + $0x20] sm:$0xff] %vm818, %v2003
        %2118 = vst.msk [vmem:[%s180 + $0x28] sm:$0xff] %vm818, %v2007
        %2119 = vst.msk [vmem:[%s180 + $0x30] sm:$0xff] %vm818, %v2011
        %2120 = vst.msk [vmem:[%s180 + $0x38] sm:$0xff] %vm818, %v2015
        %2121 = vst.msk [vmem:[%s180 + $0x40] sm:$0xff] %vm818, %v2019
        %2122 = vst.msk [vmem:[%s180 + $0x48] sm:$0xff] %vm818, %v2023
        %2123 = vst.msk [vmem:[%s180 + $0x50] sm:$0xff] %vm818, %v2027
        %2124 = vst.msk [vmem:[%s180 + $0x58] sm:$0xff] %vm818, %v2031
        %2125 = vst.msk [vmem:[%s180 + $0x60] sm:$0xff] %vm818, %v2035
        %2126 = vst.msk [vmem:[%s180 + $0x68] sm:$0xff] %vm818, %v2039
        %2127 = vst.msk [vmem:[%s180 + $0x70] sm:$0xff] %vm818, %v2043
        %2128 = vst.msk [vmem:[%s180 + $0x78] sm:$0xff] %vm818, %v2047
        %2129 = vst.msk [vmem:[%s180 + $0x80] sm:$0xff] %vm818, %v2051
        %2130 = vst.msk [vmem:[%s180 + $0x88] sm:$0xff] %vm818, %v2055
        %2131 = vst.msk [vmem:[%s180 + $0x90] sm:$0xff] %vm818, %v2059
        %2132 = vst.msk [vmem:[%s180 + $0x98] sm:$0xff] %vm818, %v2063
        %2133 = vst.msk [vmem:[%s180 + $0xa0] sm:$0xff] %vm818, %v2067
        %2134 = vst.msk [vmem:[%s180 + $0xa8] sm:$0xff] %vm818, %v2071
        %2135 = vst.msk [vmem:[%s180 + $0xb0] sm:$0xff] %vm818, %v2075
        %2136 = vst.msk [vmem:[%s180 + $0xb8] sm:$0xff] %vm818, %v2079
        %2137 = vst.msk [vmem:[%s180 + $0xc0] sm:$0xff] %vm818, %v2083
        %2138 = vst.msk [vmem:[%s180 + $0xc8] sm:$0xff] %vm818, %v2087
        %2139 = vst.msk [vmem:[%s180 + $0xd0] sm:$0xff] %vm818, %v2091
        %2140 = vst.msk [vmem:[%s180 + $0xd8] sm:$0xff] %vm818, %v2095
        %2141 = vst.msk [vmem:[%s180 + $0xe0] sm:$0xff] %vm818, %v2099
        %2142 = vst.msk [vmem:[%s180 + $0xe8] sm:$0xff] %vm818, %v2103
        %2143 = vst.msk [vmem:[%s180 + $0xf0] sm:$0xff] %vm818, %v2107
        %2144 = vst.msk [vmem:[%s180 + $0xf8] sm:$0xff] %vm818, %v2111
        %s2145 = sand.u32 %s98, 1
        %s2146 = scalar_lea.sflag [#allocation3], %s2145
        %s2147 = sand.u32 %s98, 1
        %s2148 = smul.addr %s2147, 256
        %s2149 = scalar_lea.vmem [#allocation2], %s2148
        // Predicated region
        $region29: #{tpu_custom_call.1} parent=27 // pred_check
          %p2150 = pneg %p108
        $region30: #{tpu_custom_call.1} parent=27 // pred_check_branch
          %2152 = sbr.rel (%p2150) target = $region32
        $region31: #{tpu_custom_call.1} parent=27 // pred_region
          #allocation5 [shape = 'u32[6]{0}', space=smem, size = 0x18, scoped, tag = 'DMA stride descriptor']
          %s2153 = smul.u32 16, %s22
          %2155 = vsyncadd %s2146, 0
          %s2156 = smul.addr %s23, 2
          %s2157 = smul.addr %s2153, 4
          %s2158 = sadd.s32 %s2156, %s2157
          %s2159 = smul.addr %s21, 64
          %s2160 = sadd.s32 %s2158, %s2159
          %s2161 = smul.addr %s2160, 8
          %s2162 = scalar_lea.hbm %s2, %s2161
          %s2164 = sshll.u32 1, 14
          %s2165 = sxor.u32 4294967295, %s2164
          %s2168 = sshll.u32 7, 18
          %s2169 = sxor.u32 4294967295, %s2168
          %s2170 = sand.u32 0, %s2169
          %s2172 = sor.u32 %s2170, 0
          %s2173 = sshll.u32 %s2149, 4
          %s2174 = int_to_ptr.vmem [resolvable:$true] %s2173
          %s2175 = sshll.u32 %s2162, 4
          %s2176 = int_to_ptr.hbm [resolvable:$true] %s2175
          %2182 = sst [smem:[#allocation5]] 256
          %s2183 = scalar_lea.smem [#allocation5], 1
          %2184 = sst [smem:[%s2183]] 512
          %s2185 = scalar_lea.smem [#allocation5], 2
          %2186 = sst [smem:[%s2185]] 2
          %s2187 = scalar_lea.smem [#allocation5], 3
          %2188 = sst [smem:[%s2187]] 128
          %s2189 = scalar_lea.smem [#allocation5], 4
          %2190 = sst [smem:[%s2189]] 128
          %s2191 = scalar_lea.smem [#allocation5], 5
          %2192 = sst [smem:[%s2191]] 8
          %2194 = dma.general %s2174, 4096, %s2176, %s2146, [#allocation4], [#allocation5], %s2172, 0
        $region32: #{tpu_custom_call.1} parent=27 // pred_fallthru
          _
      $region28: #{tpu_custom_call.1} parent=5 // pred_fallthru
        _
      %p2195 = scmp.le.s32.totalorder 2, %s11
      // Predicated region
      $region33: #{tpu_custom_call.1} parent=5 // pred_check
        %p2196 = pneg %p2195
      $region34: #{tpu_custom_call.1} parent=5 // pred_check_branch
        %2198 = sbr.rel (%p2196) target = $region36
      $region35: #{tpu_custom_call.1} parent=5 // pred_region
        %s2199 = ssub.s32 %s11, 2
        // Predicated region
        $region37: #{tpu_custom_call.1} parent=35 // pred_check
          %p2200 = pneg %p114
        $region38: #{tpu_custom_call.1} parent=35 // pred_check_branch
          %2202 = sbr.rel (%p2200) target = $region40
        $region39: #{tpu_custom_call.1} parent=35 // pred_region
          %s2203 = sand.u32 %s99, 1
          %s2204 = scalar_lea.sflag [#allocation3], %s2203
          %s2205 = sand.u32 %s99, 1
          %s2206 = smul.addr %s2205, 256
          %s2207 = scalar_lea.vmem [#allocation2], %s2206
          %2209 = dma.done %s2204, 4096
        $region40: #{tpu_custom_call.1} parent=35 // pred_fallthru
          _
      $region36: #{tpu_custom_call.1} parent=5 // pred_fallthru
        _
    $region6: #{tpu_custom_call.1} parent=1 // loop_footer
      %s15 = sadd.s32 1, %s11
    $region7: #{tpu_custom_call.1} parent=1 // loop_footer_branch
      %10 = sbr.rel target = $region3
    $region8: #{tpu_custom_call.1} parent=1 // loop_exit
      _
    %2210 = vsyncpa [#allocation3], 1
    %s2211 = scalar_lea.sflag [#allocation3], 1
    %2212 = vsyncpa %s2211, 1

</llo_original>
